<compile_context>
chip_gen: v7x
topology: tpu7x:2x2x1
jax: 0.10.0
libtpu: 0.0.40
codegen_flags: <defaults>
</compile_context>

<pallas_src>
import functools

import jax
import jax.numpy as jnp
from jax.experimental import pallas as pl
from jax.experimental.pallas import tpu as pltpu


def _round_up(n, m):
    return ((n + m - 1) // m) * m


def _mlp_kernel(x_ref, w1_ref, b1_ref, w2_ref, b2_ref, w3_ref, b3_ref,
                w4_ref, b4_ref, o_ref):
    # All four matmuls + ReLUs fused in one kernel invocation per batch tile.
    # MXU operands in bf16, accumulation / bias / ReLU in f32.
    x = x_ref[...].astype(jnp.bfloat16)

    h = jnp.dot(x, w1_ref[...], preferred_element_type=jnp.float32) + b1_ref[...]
    h = jnp.maximum(h, 0.0)

    h = jnp.dot(h.astype(jnp.bfloat16), w2_ref[...],
                preferred_element_type=jnp.float32) + b2_ref[...]
    h = jnp.maximum(h, 0.0)

    h = jnp.dot(h.astype(jnp.bfloat16), w3_ref[...],
                preferred_element_type=jnp.float32) + b3_ref[...]
    h = jnp.maximum(h, 0.0)

    y = jnp.dot(h.astype(jnp.bfloat16), w4_ref[...],
                preferred_element_type=jnp.float32) + b4_ref[...]
    o_ref[...] = y.astype(o_ref.dtype)


def prepare_params(params, lane=128):
    """One-time prep OUTSIDE the jitted forward.

    Transposes torch-layout (out, in) weights to (in, out), casts matmul
    operands to bf16, keeps biases as f32 (1, out) rows, and pads the final
    layer's output features up to a lane-dense multiple of 128.
    """
    w1 = jnp.asarray(params["w1"]).T.astype(jnp.bfloat16)  # (in_dim, 128)
    w2 = jnp.asarray(params["w2"]).T.astype(jnp.bfloat16)  # (128, 256)
    w3 = jnp.asarray(params["w3"]).T.astype(jnp.bfloat16)  # (256, 128)
    w4 = jnp.asarray(params["w4"]).T                       # (128, out_dim) f32
    out_dim = w4.shape[1]
    out_pad = _round_up(out_dim, lane)
    w4 = jnp.pad(w4, ((0, 0), (0, out_pad - out_dim))).astype(jnp.bfloat16)

    b1 = jnp.asarray(params["b1"]).reshape(1, -1).astype(jnp.float32)
    b2 = jnp.asarray(params["b2"]).reshape(1, -1).astype(jnp.float32)
    b3 = jnp.asarray(params["b3"]).reshape(1, -1).astype(jnp.float32)
    b4 = jnp.pad(jnp.asarray(params["b4"]).reshape(1, -1).astype(jnp.float32),
                 ((0, 0), (0, out_pad - out_dim)))

    return {"w1": w1, "b1": b1, "w2": w2, "b2": b2,
            "w3": w3, "b3": b3, "w4": w4, "b4": b4}


@functools.partial(jax.jit, static_argnames=("out_dim", "block_b"))
def mlp_forward(x, prepped, *, out_dim, block_b=256):
    """x: [B, in_dim] float32. prepped: output of prepare_params()."""
    B, in_dim = x.shape
    w1, b1 = prepped["w1"], prepped["b1"]
    w2, b2 = prepped["w2"], prepped["b2"]
    w3, b3 = prepped["w3"], prepped["b3"]
    w4, b4 = prepped["w4"], prepped["b4"]
    out_pad = w4.shape[1]

    # Batch tile: large enough to fill the MXU / amortize per-step overhead,
    # but never larger than the (8-row-rounded) batch itself.
    bb = min(block_b, _round_up(B, 8))
    B_pad = _round_up(B, bb)
    if B_pad != B:
        x = jnp.pad(x, ((0, B_pad - B), (0, 0)))
    grid = (B_pad // bb,)

    # VMEM footprint at bb=256: x tile 2x8KB, out tile 2x128KB, weights ~166KB,
    # activations <1MB -> far below the 64 MiB v7x / 128 MiB v5e/v6e VMEM, so
    # no explicit vmem_limit_bytes needed. Re-budget if block_b is pushed >8K.
    flops = 2 * B_pad * (in_dim * 128 + 128 * 256 + 256 * 128 + 128 * out_pad)
    bytes_accessed = (
        x.size * x.dtype.itemsize
        + sum(int(a.size) * a.dtype.itemsize
              for a in (w1, b1, w2, b2, w3, b3, w4, b4))
        + B_pad * out_pad * 4)

    full = lambda a: pl.BlockSpec(a.shape, lambda i: (0, 0))  # grid-invariant

    y = pl.pallas_call(
        _mlp_kernel,
        out_shape=jax.ShapeDtypeStruct((B_pad, out_pad), x.dtype),
        grid_spec=pltpu.PrefetchScalarGridSpec(
            num_scalar_prefetch=0,
            grid=grid,
            in_specs=[
                pl.BlockSpec((bb, in_dim), lambda i: (i, 0)),  # x tile
                full(w1), full(b1),
                full(w2), full(b2),
                full(w3), full(b3),
                full(w4), full(b4),
            ],
            out_specs=pl.BlockSpec((bb, out_pad), lambda i: (i, 0)),
        ),
        compiler_params=pltpu.CompilerParams(
            dimension_semantics=("parallel",)),
        cost_estimate=pl.CostEstimate(
            flops=flops, transcendentals=0, bytes_accessed=bytes_accessed),
    )(x, w1, b1, w2, b2, w3, b3, w4, b4)

    # Drop batch padding and the lane-padding of the final layer.
    return y[:B, :out_dim]


def init_params(key, in_dim, out_dim):
    """Deterministic init matching nn.Linear shapes (torch layout: W is (out, in))."""
    dims = [(128, in_dim), (256, 128), (128, 256), (out_dim, 128)]
    params = {}
    keys = jax.random.split(key, 2 * len(dims))
    for idx, (o, i) in enumerate(dims):
        bound = 1.0 / jnp.sqrt(jnp.float32(i))
        params[f"w{idx + 1}"] = jax.random.uniform(
            keys[2 * idx], (o, i), jnp.float32, -bound, bound)
        params[f"b{idx + 1}"] = jax.random.uniform(
            keys[2 * idx + 1], (o,), jnp.float32, -bound, bound)
    return params


def mlp_reference(x, params):
    """Pure-JAX f32 reference mirroring the PyTorch forward."""
    h = jax.nn.relu(x @ params["w1"].T + params["b1"])
    h = jax.nn.relu(h @ params["w2"].T + params["b2"])
    h = jax.nn.relu(h @ params["w3"].T + params["b3"])
    return h @ params["w4"].T + params["b4"]


if __name__ == "__main__":
    in_dim, out_dim, batch = 16, 4, 512
    key = jax.random.PRNGKey(0)
    k_x, k_p = jax.random.split(key)

    x = jax.random.normal(k_x, (batch, in_dim), jnp.float32)
    params = init_params(k_p, in_dim, out_dim)
    prepped = prepare_params(params)

    y = mlp_forward(x, prepped, out_dim=out_dim, block_b=256)
    y = jax.block_until_ready(y)

    y_ref = mlp_reference(x, params)
    assert y.shape == (batch, out_dim)
    # bf16 MXU operands with f32 accumulation -> small drift vs f32 reference.
    assert jnp.allclose(y, y_ref, atol=5e-2, rtol=5e-2), "mismatch vs reference"

    print("KERNEL_OK")
</pallas_src>

<mosaic_0001>
module attributes {stable_mosaic.version = 11 : i64} {
  func.func @_mlp_kernel(%arg0: i32, %arg1: memref<256x16xf32, #tpu.memory_space<vmem>>, %arg2: memref<16x128xbf16, #tpu.memory_space<vmem>>, %arg3: memref<1x128xf32, #tpu.memory_space<vmem>>, %arg4: memref<128x256xbf16, #tpu.memory_space<vmem>>, %arg5: memref<1x256xf32, #tpu.memory_space<vmem>>, %arg6: memref<256x128xbf16, #tpu.memory_space<vmem>>, %arg7: memref<1x128xf32, #tpu.memory_space<vmem>>, %arg8: memref<128x128xbf16, #tpu.memory_space<vmem>>, %arg9: memref<1x128xf32, #tpu.memory_space<vmem>>, %arg10: memref<256x128xf32, #tpu.memory_space<vmem>>) attributes {dimension_semantics = [#tpu.dimension_semantics<parallel>], iteration_bounds = array<i64: 2>, scalar_prefetch = 0 : i64, scratch_operands = 0 : i64, tpu.core_type = #tpu.core_type<tc>, window_params = [{transform_indices = @transform_0, window_bounds = array<i64: 256, 16>}, {pipeline_mode = #tpu.pipeline_mode<synchronous>, transform_indices = @transform_1, window_bounds = array<i64: 16, 128>}, {pipeline_mode = #tpu.pipeline_mode<synchronous>, transform_indices = @transform_2, window_bounds = array<i64: 1, 128>}, {pipeline_mode = #tpu.pipeline_mode<synchronous>, transform_indices = @transform_3, window_bounds = array<i64: 128, 256>}, {pipeline_mode = #tpu.pipeline_mode<synchronous>, transform_indices = @transform_4, window_bounds = array<i64: 1, 256>}, {pipeline_mode = #tpu.pipeline_mode<synchronous>, transform_indices = @transform_5, window_bounds = array<i64: 256, 128>}, {pipeline_mode = #tpu.pipeline_mode<synchronous>, transform_indices = @transform_6, window_bounds = array<i64: 1, 128>}, {pipeline_mode = #tpu.pipeline_mode<synchronous>, transform_indices = @transform_7, window_bounds = array<i64: 128, 128>}, {pipeline_mode = #tpu.pipeline_mode<synchronous>, transform_indices = @transform_8, window_bounds = array<i64: 1, 128>}, {transform_indices = @transform_9, window_bounds = array<i64: 256, 128>}]} {
    %c0 = arith.constant 0 : index
    %c0_0 = arith.constant 0 : index
    %0 = vector.load %arg1[%c0, %c0_0] : memref<256x16xf32, #tpu.memory_space<vmem>>, vector<256x16xf32>
    %1 = arith.truncf %0 : vector<256x16xf32> to vector<256x16xbf16>
    %c0_1 = arith.constant 0 : index
    %c0_2 = arith.constant 0 : index
    %2 = vector.load %arg2[%c0_1, %c0_2] : memref<16x128xbf16, #tpu.memory_space<vmem>>, vector<16x128xbf16>
    %cst = arith.constant dense<0.000000e+00> : vector<256x128xf32>
    %3 = tpu.matmul %1, %2, %cst {dimension_numbers = #tpu.dot_dimension_numbers<[1], [0], [0], [1], [0, 0, 1, 1], [], []>} : vector<256x16xbf16>, vector<16x128xbf16>, vector<256x128xf32> -> vector<256x128xf32>
    %c0_3 = arith.constant 0 : index
    %c0_4 = arith.constant 0 : index
    %4 = vector.load %arg3[%c0_3, %c0_4] : memref<1x128xf32, #tpu.memory_space<vmem>>, vector<1x128xf32>
    %5 = vector.broadcast %4 : vector<1x128xf32> to vector<256x128xf32>
    %6 = arith.addf %3, %5 : vector<256x128xf32>
    %cst_5 = arith.constant 0.000000e+00 : f32
    %7 = vector.broadcast %cst_5 : f32 to vector<256x128xf32>
    %8 = arith.maximumf %6, %7 : vector<256x128xf32>
    %9 = arith.truncf %8 : vector<256x128xf32> to vector<256x128xbf16>
    %c0_6 = arith.constant 0 : index
    %c0_7 = arith.constant 0 : index
    %10 = vector.load %arg4[%c0_6, %c0_7] : memref<128x256xbf16, #tpu.memory_space<vmem>>, vector<128x256xbf16>
    %cst_8 = arith.constant dense<0.000000e+00> : vector<256x256xf32>
    %11 = tpu.matmul %9, %10, %cst_8 {dimension_numbers = #tpu.dot_dimension_numbers<[1], [0], [0], [1], [0, 0, 1, 1], [], []>} : vector<256x128xbf16>, vector<128x256xbf16>, vector<256x256xf32> -> vector<256x256xf32>
    %c0_9 = arith.constant 0 : index
    %c0_10 = arith.constant 0 : index
    %12 = vector.load %arg5[%c0_9, %c0_10] : memref<1x256xf32, #tpu.memory_space<vmem>>, vector<1x256xf32>
    %13 = vector.broadcast %12 : vector<1x256xf32> to vector<256x256xf32>
    %14 = arith.addf %11, %13 : vector<256x256xf32>
    %cst_11 = arith.constant 0.000000e+00 : f32
    %15 = vector.broadcast %cst_11 : f32 to vector<256x256xf32>
    %16 = arith.maximumf %14, %15 : vector<256x256xf32>
    %17 = arith.truncf %16 : vector<256x256xf32> to vector<256x256xbf16>
    %c0_12 = arith.constant 0 : index
    %c0_13 = arith.constant 0 : index
    %18 = vector.load %arg6[%c0_12, %c0_13] : memref<256x128xbf16, #tpu.memory_space<vmem>>, vector<256x128xbf16>
    %cst_14 = arith.constant dense<0.000000e+00> : vector<256x128xf32>
    %19 = tpu.matmul %17, %18, %cst_14 {dimension_numbers = #tpu.dot_dimension_numbers<[1], [0], [0], [1], [0, 0, 1, 1], [], []>} : vector<256x256xbf16>, vector<256x128xbf16>, vector<256x128xf32> -> vector<256x128xf32>
    %c0_15 = arith.constant 0 : index
    %c0_16 = arith.constant 0 : index
    %20 = vector.load %arg7[%c0_15, %c0_16] : memref<1x128xf32, #tpu.memory_space<vmem>>, vector<1x128xf32>
    %21 = vector.broadcast %20 : vector<1x128xf32> to vector<256x128xf32>
    %22 = arith.addf %19, %21 : vector<256x128xf32>
    %cst_17 = arith.constant 0.000000e+00 : f32
    %23 = vector.broadcast %cst_17 : f32 to vector<256x128xf32>
    %24 = arith.maximumf %22, %23 : vector<256x128xf32>
    %25 = arith.truncf %24 : vector<256x128xf32> to vector<256x128xbf16>
    %c0_18 = arith.constant 0 : index
    %c0_19 = arith.constant 0 : index
    %26 = vector.load %arg8[%c0_18, %c0_19] : memref<128x128xbf16, #tpu.memory_space<vmem>>, vector<128x128xbf16>
    %cst_20 = arith.constant dense<0.000000e+00> : vector<256x128xf32>
    %27 = tpu.matmul %25, %26, %cst_20 {dimension_numbers = #tpu.dot_dimension_numbers<[1], [0], [0], [1], [0, 0, 1, 1], [], []>} : vector<256x128xbf16>, vector<128x128xbf16>, vector<256x128xf32> -> vector<256x128xf32>
    %c0_21 = arith.constant 0 : index
    %c0_22 = arith.constant 0 : index
    %28 = vector.load %arg9[%c0_21, %c0_22] : memref<1x128xf32, #tpu.memory_space<vmem>>, vector<1x128xf32>
    %29 = vector.broadcast %28 : vector<1x128xf32> to vector<256x128xf32>
    %30 = arith.addf %27, %29 : vector<256x128xf32>
    %c0_23 = arith.constant 0 : index
    %c0_24 = arith.constant 0 : index
    %31 = vector.load %arg10[%c0_23, %c0_24] : memref<256x128xf32, #tpu.memory_space<vmem>>, vector<256x128xf32>
    tpu.vector_store %arg10[%c0_23, %c0_24], %30 {strides = array<i32>} : memref<256x128xf32, #tpu.memory_space<vmem>>, vector<256x128xf32>,
    return
  }
  func.func @transform_0(%arg0: i32) -> (i32, i32) {
    %c0_i32 = arith.constant 0 : i32
    %c0_i32_0 = arith.constant 0 : i32
    return %arg0, %c0_i32 : i32, i32
  }
  func.func @transform_1(%arg0: i32) -> (i32, i32) {
    %c0_i32 = arith.constant 0 : i32
    %c0_i32_0 = arith.constant 0 : i32
    %c0_i32_1 = arith.constant 0 : i32
    return %c0_i32, %c0_i32_0 : i32, i32
  }
  func.func @transform_2(%arg0: i32) -> (i32, i32) {
    %c0_i32 = arith.constant 0 : i32
    %c0_i32_0 = arith.constant 0 : i32
    %c0_i32_1 = arith.constant 0 : i32
    return %c0_i32, %c0_i32_0 : i32, i32
  }
  func.func @transform_3(%arg0: i32) -> (i32, i32) {
    %c0_i32 = arith.constant 0 : i32
    %c0_i32_0 = arith.constant 0 : i32
    %c0_i32_1 = arith.constant 0 : i32
    return %c0_i32, %c0_i32_0 : i32, i32
  }
  func.func @transform_4(%arg0: i32) -> (i32, i32) {
    %c0_i32 = arith.constant 0 : i32
    %c0_i32_0 = arith.constant 0 : i32
    %c0_i32_1 = arith.constant 0 : i32
    return %c0_i32, %c0_i32_0 : i32, i32
  }
  func.func @transform_5(%arg0: i32) -> (i32, i32) {
    %c0_i32 = arith.constant 0 : i32
    %c0_i32_0 = arith.constant 0 : i32
    %c0_i32_1 = arith.constant 0 : i32
    return %c0_i32, %c0_i32_0 : i32, i32
  }
  func.func @transform_6(%arg0: i32) -> (i32, i32) {
    %c0_i32 = arith.constant 0 : i32
    %c0_i32_0 = arith.constant 0 : i32
    %c0_i32_1 = arith.constant 0 : i32
    return %c0_i32, %c0_i32_0 : i32, i32
  }
  func.func @transform_7(%arg0: i32) -> (i32, i32) {
    %c0_i32 = arith.constant 0 : i32
    %c0_i32_0 = arith.constant 0 : i32
    %c0_i32_1 = arith.constant 0 : i32
    return %c0_i32, %c0_i32_0 : i32, i32
  }
  func.func @transform_8(%arg0: i32) -> (i32, i32) {
    %c0_i32 = arith.constant 0 : i32
    %c0_i32_0 = arith.constant 0 : i32
    %c0_i32_1 = arith.constant 0 : i32
    return %c0_i32, %c0_i32_0 : i32, i32
  }
  func.func @transform_9(%arg0: i32) -> (i32, i32) {
    %c0_i32 = arith.constant 0 : i32
    %c0_i32_0 = arith.constant 0 : i32
    return %arg0, %c0_i32 : i32, i32
  }
}

</mosaic_0001>

<llo_original>
// kernel: mlp_forward.1
$region0: #{mlp_forward.1}
  #allocation0 [shape = 'u32[]', space=smem, size = 0x4, offset = 0x4, fixed_abs, tag = 'smem constant byte address 0x4 - core index']
  #allocation1 [shape = 'u32[144,128]{1,0:T(1,128)}', space=vmem, size = 0x12000, scoped, tag = 'internal scratch']
  %s0 = inlined_call_operand.vmem [shape: f32[512,16], index: 0, kind: input, shape index: {}]
  %s1 = inlined_call_operand.vmem [shape: bf16[16,128], index: 1, kind: input, shape index: {}]
  %s2 = inlined_call_operand.vmem [shape: f32[1,128], index: 2, kind: input, shape index: {}]
  %s3 = inlined_call_operand.vmem [shape: bf16[128,256], index: 3, kind: input, shape index: {}]
  %s4 = inlined_call_operand.vmem [shape: f32[1,256], index: 4, kind: input, shape index: {}]
  %s5 = inlined_call_operand.vmem [shape: bf16[256,128], index: 5, kind: input, shape index: {}]
  %s6 = inlined_call_operand.vmem [shape: f32[1,128], index: 6, kind: input, shape index: {}]
  %s7 = inlined_call_operand.vmem [shape: bf16[128,128], index: 7, kind: input, shape index: {}]
  %s8 = inlined_call_operand.vmem [shape: f32[1,128], index: 8, kind: input, shape index: {}]
  %s9 = inlined_call_operand.vmem [shape: f32[512,128], index: 9, kind: output, shape index: {}]
  %s10 = sld [smem:[#allocation0]]
  $region69: #{mlp_forward.1} parent=0
    _
  %s12 = ssub.s32 1, %s10
  %s13 = scalar_select 0, %s12, %s10
  loop: start=0, step=1, limit=4
  $region2: #{mlp_forward.1} parent=0 // loop_pre_header
    _
  $region3: #{mlp_forward.1} parent=0 // loop_header
    %s15 = sphi 0, %s19
    %p16 = scmp.ge.s32.totalorder %s15, 4
    %s25 = sphi 0, %s27
    %s28 = sphi 0, %s25
    %s29 = sphi 0, %s28
    %s45 = sphi 0, %s29
    %s49 = sphi 0, %s49
    %s51 = sphi 0, %s49
    %s52 = sphi 0, %s51
    %s66 = sphi 0, %s52
    %s70 = sphi 0, %s70
    %s72 = sphi 0, %s70
    %s73 = sphi 0, %s72
    %s87 = sphi 0, %s73
    %s91 = sphi 0, %s91
    %s93 = sphi 0, %s91
    %s94 = sphi 0, %s93
    %s108 = sphi 0, %s94
    %s112 = sphi 0, %s112
    %s114 = sphi 0, %s112
    %s115 = sphi 0, %s114
    %s129 = sphi 0, %s115
    %s133 = sphi 0, %s133
    %s135 = sphi 0, %s133
    %s136 = sphi 0, %s135
    %s150 = sphi 0, %s136
    %s154 = sphi 0, %s154
    %s156 = sphi 0, %s154
    %s157 = sphi 0, %s156
    %s171 = sphi 0, %s157
    %s175 = sphi 0, %s175
    %s177 = sphi 0, %s175
    %s178 = sphi 0, %s177
    %s192 = sphi 0, %s178
    %s196 = sphi 0, %s196
    %s198 = sphi 0, %s196
    %s199 = sphi 0, %s198
    %s213 = sphi 0, %s199
    %s219 = sphi 0, %s221
    %s222 = sphi 0, %s219
    %s223 = sphi 0, %s222
    %s239 = sphi 0, %s223
  $region4: #{mlp_forward.1} parent=0 // loop_header_branch
    %18 = sbr.rel (%p16) target = $region8
  $region5: #{mlp_forward.1} parent=0 // loop_body
    %s20 = ssub.s32 %s15, 1
    %s21 = ssub.s32 %s15, 2
    %s22 = sadd.s32 %s15, 1
    %s23 = ssub.s32 %s15, %s22
    %p24 = scmp.eq.s32.totalorder %s23, 0
    %s26 = sadd.s32 %s25, 1
    %s27 = scalar_select %p24, %s25, %s26
    %p30 = pneg %p24
    %p31 = scmp.eq.s32.totalorder %s15, 1
    %p32 = por %p30, %p31
    %p33 = scmp.ne.s32.totalorder %s25, %s28
    %p34 = scmp.eq.s32.totalorder %s15, 0
    %p35 = por %p33, %p34
    %p36 = scmp.ne.s32.totalorder %s25, %s28
    %p37 = scmp.eq.s32.totalorder %s20, 1
    %p38 = por %p36, %p37
    %p39 = scmp.ne.s32.totalorder %s28, %s29
    %p40 = scmp.eq.s32.totalorder %s20, 0
    %p41 = por %p39, %p40
    %p42 = scmp.ne.s32.totalorder %s28, %s29
    %p43 = scmp.eq.s32.totalorder %s21, 1
    %p44 = por %p42, %p43
    %p46 = scmp.ne.s32.totalorder %s29, %s45
    %p47 = scmp.eq.s32.totalorder %s21, 0
    %p48 = por %p46, %p47
    %s50 = sadd.s32 %s49, 1
    %p53 = scmp.eq.s32.totalorder %s15, 1
    %p54 = scmp.ne.s32.totalorder %s49, %s51
    %p55 = scmp.eq.s32.totalorder %s15, 0
    %p56 = por %p54, %p55
    %p57 = scmp.ne.s32.totalorder %s49, %s51
    %p58 = scmp.eq.s32.totalorder %s20, 1
    %p59 = por %p57, %p58
    %p60 = scmp.ne.s32.totalorder %s51, %s52
    %p61 = scmp.eq.s32.totalorder %s20, 0
    %p62 = por %p60, %p61
    %p63 = scmp.ne.s32.totalorder %s51, %s52
    %p64 = scmp.eq.s32.totalorder %s21, 1
    %p65 = por %p63, %p64
    %p67 = scmp.ne.s32.totalorder %s52, %s66
    %p68 = scmp.eq.s32.totalorder %s21, 0
    %p69 = por %p67, %p68
    %s71 = sadd.s32 %s70, 1
    %p74 = scmp.eq.s32.totalorder %s15, 1
    %p75 = scmp.ne.s32.totalorder %s70, %s72
    %p76 = scmp.eq.s32.totalorder %s15, 0
    %p77 = por %p75, %p76
    %p78 = scmp.ne.s32.totalorder %s70, %s72
    %p79 = scmp.eq.s32.totalorder %s20, 1
    %p80 = por %p78, %p79
    %p81 = scmp.ne.s32.totalorder %s72, %s73
    %p82 = scmp.eq.s32.totalorder %s20, 0
    %p83 = por %p81, %p82
    %p84 = scmp.ne.s32.totalorder %s72, %s73
    %p85 = scmp.eq.s32.totalorder %s21, 1
    %p86 = por %p84, %p85
    %p88 = scmp.ne.s32.totalorder %s73, %s87
    %p89 = scmp.eq.s32.totalorder %s21, 0
    %p90 = por %p88, %p89
    %s92 = sadd.s32 %s91, 1
    %p95 = scmp.eq.s32.totalorder %s15, 1
    %p96 = scmp.ne.s32.totalorder %s91, %s93
    %p97 = scmp.eq.s32.totalorder %s15, 0
    %p98 = por %p96, %p97
    %p99 = scmp.ne.s32.totalorder %s91, %s93
    %p100 = scmp.eq.s32.totalorder %s20, 1
    %p101 = por %p99, %p100
    %p102 = scmp.ne.s32.totalorder %s93, %s94
    %p103 = scmp.eq.s32.totalorder %s20, 0
    %p104 = por %p102, %p103
    %p105 = scmp.ne.s32.totalorder %s93, %s94
    %p106 = scmp.eq.s32.totalorder %s21, 1
    %p107 = por %p105, %p106
    %p109 = scmp.ne.s32.totalorder %s94, %s108
    %p110 = scmp.eq.s32.totalorder %s21, 0
    %p111 = por %p109, %p110
    %s113 = sadd.s32 %s112, 1
    %p116 = scmp.eq.s32.totalorder %s15, 1
    %p117 = scmp.ne.s32.totalorder %s112, %s114
    %p118 = scmp.eq.s32.totalorder %s15, 0
    %p119 = por %p117, %p118
    %p120 = scmp.ne.s32.totalorder %s112, %s114
    %p121 = scmp.eq.s32.totalorder %s20, 1
    %p122 = por %p120, %p121
    %p123 = scmp.ne.s32.totalorder %s114, %s115
    %p124 = scmp.eq.s32.totalorder %s20, 0
    %p125 = por %p123, %p124
    %p126 = scmp.ne.s32.totalorder %s114, %s115
    %p127 = scmp.eq.s32.totalorder %s21, 1
    %p128 = por %p126, %p127
    %p130 = scmp.ne.s32.totalorder %s115, %s129
    %p131 = scmp.eq.s32.totalorder %s21, 0
    %p132 = por %p130, %p131
    %s134 = sadd.s32 %s133, 1
    %p137 = scmp.eq.s32.totalorder %s15, 1
    %p138 = scmp.ne.s32.totalorder %s133, %s135
    %p139 = scmp.eq.s32.totalorder %s15, 0
    %p140 = por %p138, %p139
    %p141 = scmp.ne.s32.totalorder %s133, %s135
    %p142 = scmp.eq.s32.totalorder %s20, 1
    %p143 = por %p141, %p142
    %p144 = scmp.ne.s32.totalorder %s135, %s136
    %p145 = scmp.eq.s32.totalorder %s20, 0
    %p146 = por %p144, %p145
    %p147 = scmp.ne.s32.totalorder %s135, %s136
    %p148 = scmp.eq.s32.totalorder %s21, 1
    %p149 = por %p147, %p148
    %p151 = scmp.ne.s32.totalorder %s136, %s150
    %p152 = scmp.eq.s32.totalorder %s21, 0
    %p153 = por %p151, %p152
    %s155 = sadd.s32 %s154, 1
    %p158 = scmp.eq.s32.totalorder %s15, 1
    %p159 = scmp.ne.s32.totalorder %s154, %s156
    %p160 = scmp.eq.s32.totalorder %s15, 0
    %p161 = por %p159, %p160
    %p162 = scmp.ne.s32.totalorder %s154, %s156
    %p163 = scmp.eq.s32.totalorder %s20, 1
    %p164 = por %p162, %p163
    %p165 = scmp.ne.s32.totalorder %s156, %s157
    %p166 = scmp.eq.s32.totalorder %s20, 0
    %p167 = por %p165, %p166
    %p168 = scmp.ne.s32.totalorder %s156, %s157
    %p169 = scmp.eq.s32.totalorder %s21, 1
    %p170 = por %p168, %p169
    %p172 = scmp.ne.s32.totalorder %s157, %s171
    %p173 = scmp.eq.s32.totalorder %s21, 0
    %p174 = por %p172, %p173
    %s176 = sadd.s32 %s175, 1
    %p179 = scmp.eq.s32.totalorder %s15, 1
    %p180 = scmp.ne.s32.totalorder %s175, %s177
    %p181 = scmp.eq.s32.totalorder %s15, 0
    %p182 = por %p180, %p181
    %p183 = scmp.ne.s32.totalorder %s175, %s177
    %p184 = scmp.eq.s32.totalorder %s20, 1
    %p185 = por %p183, %p184
    %p186 = scmp.ne.s32.totalorder %s177, %s178
    %p187 = scmp.eq.s32.totalorder %s20, 0
    %p188 = por %p186, %p187
    %p189 = scmp.ne.s32.totalorder %s177, %s178
    %p190 = scmp.eq.s32.totalorder %s21, 1
    %p191 = por %p189, %p190
    %p193 = scmp.ne.s32.totalorder %s178, %s192
    %p194 = scmp.eq.s32.totalorder %s21, 0
    %p195 = por %p193, %p194
    %s197 = sadd.s32 %s196, 1
    %p200 = scmp.eq.s32.totalorder %s15, 1
    %p201 = scmp.ne.s32.totalorder %s196, %s198
    %p202 = scmp.eq.s32.totalorder %s15, 0
    %p203 = por %p201, %p202
    %p204 = scmp.ne.s32.totalorder %s196, %s198
    %p205 = scmp.eq.s32.totalorder %s20, 1
    %p206 = por %p204, %p205
    %p207 = scmp.ne.s32.totalorder %s198, %s199
    %p208 = scmp.eq.s32.totalorder %s20, 0
    %p209 = por %p207, %p208
    %p210 = scmp.ne.s32.totalorder %s198, %s199
    %p211 = scmp.eq.s32.totalorder %s21, 1
    %p212 = por %p210, %p211
    %p214 = scmp.ne.s32.totalorder %s199, %s213
    %p215 = scmp.eq.s32.totalorder %s21, 0
    %p216 = por %p214, %p215
    %s217 = ssub.s32 %s15, %s22
    %p218 = scmp.eq.s32.totalorder %s217, 0
    %s220 = sadd.s32 %s219, 1
    %s221 = scalar_select %p218, %s219, %s220
    %p224 = pneg %p218
    %p225 = scmp.eq.s32.totalorder %s15, 1
    %p226 = por %p224, %p225
    %p227 = scmp.ne.s32.totalorder %s219, %s222
    %p228 = scmp.eq.s32.totalorder %s15, 0
    %p229 = por %p227, %p228
    %p230 = scmp.ne.s32.totalorder %s219, %s222
    %p231 = scmp.eq.s32.totalorder %s20, 1
    %p232 = por %p230, %p231
    %p233 = scmp.ne.s32.totalorder %s222, %s223
    %p234 = scmp.eq.s32.totalorder %s20, 0
    %p235 = por %p233, %p234
    %p236 = scmp.ne.s32.totalorder %s222, %s223
    %p237 = scmp.eq.s32.totalorder %s21, 1
    %p238 = por %p236, %p237
    %p240 = scmp.ne.s32.totalorder %s223, %s239
    %p241 = scmp.eq.s32.totalorder %s21, 0
    %p242 = por %p240, %p241
    %p243 = scmp.le.s32.totalorder 1, %s15
    %p244 = scmp.lt.s32.totalorder %s15, 3
    %p245 = pnand %p243, %p244
    %p246 = pneg %p245
    // Predicated region
    $region9: #{mlp_forward.1} parent=5 // pred_check
      _
    $region10: #{mlp_forward.1} parent=5 // pred_check_branch
      %248 = sbr.rel (%p245) target = $region12
    $region11: #{mlp_forward.1} parent=5 // pred_region
      %s249 = ssub.s32 %s15, 1
      // Predicated region
      $region13: #{mlp_forward.1} parent=11 // pred_check
        %p250 = pneg %p62
      $region14: #{mlp_forward.1} parent=11 // pred_check_branch
        %252 = sbr.rel (%p250) target = $region16
      $region15: #{mlp_forward.1} parent=11 // pred_region
        _
      $region16: #{mlp_forward.1} parent=11 // pred_fallthru
        _
      // Predicated region
      $region17: #{mlp_forward.1} parent=11 // pred_check
        %p253 = pneg %p83
      $region18: #{mlp_forward.1} parent=11 // pred_check_branch
        %255 = sbr.rel (%p253) target = $region20
      $region19: #{mlp_forward.1} parent=11 // pred_region
        _
      $region20: #{mlp_forward.1} parent=11 // pred_fallthru
        _
      // Predicated region
      $region21: #{mlp_forward.1} parent=11 // pred_check
        %p256 = pneg %p104
      $region22: #{mlp_forward.1} parent=11 // pred_check_branch
        %258 = sbr.rel (%p256) target = $region24
      $region23: #{mlp_forward.1} parent=11 // pred_region
        _
      $region24: #{mlp_forward.1} parent=11 // pred_fallthru
        _
      // Predicated region
      $region25: #{mlp_forward.1} parent=11 // pred_check
        %p259 = pneg %p125
      $region26: #{mlp_forward.1} parent=11 // pred_check_branch
        %261 = sbr.rel (%p259) target = $region28
      $region27: #{mlp_forward.1} parent=11 // pred_region
        _
      $region28: #{mlp_forward.1} parent=11 // pred_fallthru
        _
      // Predicated region
      $region29: #{mlp_forward.1} parent=11 // pred_check
        %p262 = pneg %p146
      $region30: #{mlp_forward.1} parent=11 // pred_check_branch
        %264 = sbr.rel (%p262) target = $region32
      $region31: #{mlp_forward.1} parent=11 // pred_region
        _
      $region32: #{mlp_forward.1} parent=11 // pred_fallthru
        _
      // Predicated region
      $region33: #{mlp_forward.1} parent=11 // pred_check
        %p265 = pneg %p167
      $region34: #{mlp_forward.1} parent=11 // pred_check_branch
        %267 = sbr.rel (%p265) target = $region36
      $region35: #{mlp_forward.1} parent=11 // pred_region
        _
      $region36: #{mlp_forward.1} parent=11 // pred_fallthru
        _
      // Predicated region
      $region37: #{mlp_forward.1} parent=11 // pred_check
        %p268 = pneg %p188
      $region38: #{mlp_forward.1} parent=11 // pred_check_branch
        %270 = sbr.rel (%p268) target = $region40
      $region39: #{mlp_forward.1} parent=11 // pred_region
        _
      $region40: #{mlp_forward.1} parent=11 // pred_fallthru
        _
      // Predicated region
      $region41: #{mlp_forward.1} parent=11 // pred_check
        %p271 = pneg %p209
      $region42: #{mlp_forward.1} parent=11 // pred_check_branch
        %273 = sbr.rel (%p271) target = $region44
      $region43: #{mlp_forward.1} parent=11 // pred_region
        _
      $region44: #{mlp_forward.1} parent=11 // pred_fallthru
        _
    $region12: #{mlp_forward.1} parent=5 // pred_fallthru
      _
    %p274 = scmp.lt.s32.totalorder %s15, 2
    // Predicated region
    $region45: #{mlp_forward.1} parent=5 // pred_check
      %p275 = pneg %p274
    $region46: #{mlp_forward.1} parent=5 // pred_check_branch
      %277 = sbr.rel (%p275) target = $region48
    $region47: #{mlp_forward.1} parent=5 // pred_region
      // Predicated region
      $region49: #{mlp_forward.1} parent=47 // pred_check
        %p278 = pneg %p35
      $region50: #{mlp_forward.1} parent=47 // pred_check_branch
        %280 = sbr.rel (%p278) target = $region52
      $region51: #{mlp_forward.1} parent=47 // pred_region
        %s281 = smul.u32 32, %s15
        %p282 = scmp.lt.s32.totalorder %s281, 63
        %s283 = scalar_select %p282, %s281, 63
        %s284 = smul.addr %s283, 8
        %s285 = scalar_lea.vmem %s0, %s284
        %s286 = smul.u32 32, %s15
      $region52: #{mlp_forward.1} parent=47 // pred_fallthru
        _
    $region48: #{mlp_forward.1} parent=5 // pred_fallthru
      _
    %p287 = scmp.le.s32.totalorder 1, %s15
    %p288 = scmp.lt.s32.totalorder %s15, 3
    %p289 = pnand %p287, %p288
    %p290 = pneg %p289
    // Predicated region
    $region53: #{mlp_forward.1} parent=5 // pred_check
      _
    $region54: #{mlp_forward.1} parent=5 // pred_check_branch
      %292 = sbr.rel (%p289) target = $region56
    $region55: #{mlp_forward.1} parent=5 // pred_region
      %s293 = ssub.s32 %s15, 1
      %s294 = smul.u32 32, %s20
      %p295 = scmp.lt.s32.totalorder %s294, 63
      %s296 = scalar_select %p295, %s294, 63
      %s297 = smul.addr %s296, 8
      %s298 = scalar_lea.vmem %s0, %s297
      %p299 = pneg %p41
      %p300 = pneg %p38
      %p301 = pneg %p62
      %p302 = pneg %p59
      %p303 = pneg %p83
      %p304 = pneg %p80
      %p305 = pneg %p104
      %p306 = pneg %p101
      %p307 = pneg %p125
      %p308 = pneg %p122
      %p309 = pneg %p146
      %p310 = pneg %p143
      %p311 = pneg %p167
      %p312 = pneg %p164
      %p313 = pneg %p188
      %p314 = pneg %p185
      %p315 = pneg %p209
      %p316 = pneg %p206
      %p317 = pneg %p235
      %p318 = pneg %p232
      %s319 = smul.u32 32, %s20
      %p320 = scmp.lt.s32.totalorder %s319, 63
      %s321 = scalar_select %p320, %s319, 63
      %s322 = smul.addr %s321, 8
      %s323 = scalar_lea.vmem %s9, %s322
      %s324 = smul.u32 32, %s20
      %p325 = scmp.lt.s32.totalorder %s324, 63
      %s326 = scalar_select %p325, %s324, 63
      %s327 = smul.addr %s326, 8
      %s328 = scalar_lea.vmem %s0, %s327
      %s329 = smul.u32 32, %s20
      %s330 = smul.u32 32, %s20
      %p331 = scmp.lt.s32.totalorder %s330, 63
      %s332 = scalar_select %p331, %s330, 63
      %s333 = smul.addr %s332, 8
      %s334 = scalar_lea.vmem %s9, %s333
      %s335 = smul.u32 32, %s20
      %v337 = vld [vmem:[%s328] sm:$0xff]
      %v338 = vld [vmem:[%s328 + $0x8] sm:$0xff]
      %v339 = vld [vmem:[%s328 + $0x10] sm:$0xff]
      %v340 = vld [vmem:[%s328 + $0x18] sm:$0xff]
      %v341 = vld [vmem:[%s328 + $0x20] sm:$0xff]
      %v342 = vld [vmem:[%s328 + $0x28] sm:$0xff]
      %v343 = vld [vmem:[%s328 + $0x30] sm:$0xff]
      %v344 = vld [vmem:[%s328 + $0x38] sm:$0xff]
      %v345 = vld [vmem:[%s328 + $0x40] sm:$0xff]
      %v346 = vld [vmem:[%s328 + $0x48] sm:$0xff]
      %v347 = vld [vmem:[%s328 + $0x50] sm:$0xff]
      %v348 = vld [vmem:[%s328 + $0x58] sm:$0xff]
      %v349 = vld [vmem:[%s328 + $0x60] sm:$0xff]
      %v350 = vld [vmem:[%s328 + $0x68] sm:$0xff]
      %v351 = vld [vmem:[%s328 + $0x70] sm:$0xff]
      %v352 = vld [vmem:[%s328 + $0x78] sm:$0xff]
      %v353 = vld [vmem:[%s328 + $0x80] sm:$0xff]
      %v354 = vld [vmem:[%s328 + $0x88] sm:$0xff]
      %v355 = vld [vmem:[%s328 + $0x90] sm:$0xff]
      %v356 = vld [vmem:[%s328 + $0x98] sm:$0xff]
      %v357 = vld [vmem:[%s328 + $0xa0] sm:$0xff]
      %v358 = vld [vmem:[%s328 + $0xa8] sm:$0xff]
      %v359 = vld [vmem:[%s328 + $0xb0] sm:$0xff]
      %v360 = vld [vmem:[%s328 + $0xb8] sm:$0xff]
      %v361 = vld [vmem:[%s328 + $0xc0] sm:$0xff]
      %v362 = vld [vmem:[%s328 + $0xc8] sm:$0xff]
      %v363 = vld [vmem:[%s328 + $0xd0] sm:$0xff]
      %v364 = vld [vmem:[%s328 + $0xd8] sm:$0xff]
      %v365 = vld [vmem:[%s328 + $0xe0] sm:$0xff]
      %v366 = vld [vmem:[%s328 + $0xe8] sm:$0xff]
      %v367 = vld [vmem:[%s328 + $0xf0] sm:$0xff]
      %v368 = vld [vmem:[%s328 + $0xf8] sm:$0xff]
      %v369 = vpack.c.bf16 %v338, %v337
      %v370 = vpack.c.bf16 %v340, %v339
      %v371 = vpack.c.bf16 %v342, %v341
      %v372 = vpack.c.bf16 %v344, %v343
      %v373 = vpack.c.bf16 %v346, %v345
      %v374 = vpack.c.bf16 %v348, %v347
      %v375 = vpack.c.bf16 %v350, %v349
      %v376 = vpack.c.bf16 %v352, %v351
      %v377 = vpack.c.bf16 %v354, %v353
      %v378 = vpack.c.bf16 %v356, %v355
      %v379 = vpack.c.bf16 %v358, %v357
      %v380 = vpack.c.bf16 %v360, %v359
      %v381 = vpack.c.bf16 %v362, %v361
      %v382 = vpack.c.bf16 %v364, %v363
      %v383 = vpack.c.bf16 %v366, %v365
      %v384 = vpack.c.bf16 %v368, %v367
      %v385 = vld [vmem:[%s1] sm:$0xf]
      %v386 = vld [vmem:[%s1 + $0x4] sm:$0xf]
      %v387 = vld [vmem:[%s2] sm:$0x1]
      %v389 = vlaneseq
      %v390 = vshrl.u32 %v389, 7
      %v391 = vsub.s32 0, %v390
      %v392 = vrot.slane %v387, %v391
      %v396 = vunpack.c.l.b16 %v385
      %v397 = vunpack.c.l.b16 %v386
      %v398 = vpack.c.b16 %v397, %v396
      %vm400 = vcmask 130048
      %v402 = vsel %vm400, %v369, 0
      %v405 = vsel %vm400, %v370, 0
      %v408 = vsel %vm400, %v371, 0
      %v411 = vsel %vm400, %v372, 0
      %v414 = vsel %vm400, %v373, 0
      %v417 = vsel %vm400, %v374, 0
      %v420 = vsel %vm400, %v375, 0
      %v423 = vsel %vm400, %v376, 0
      %v426 = vsel %vm400, %v377, 0
      %v429 = vsel %vm400, %v378, 0
      %v432 = vsel %vm400, %v379, 0
      %v435 = vsel %vm400, %v380, 0
      %v438 = vsel %vm400, %v381, 0
      %v441 = vsel %vm400, %v382, 0
      %v444 = vsel %vm400, %v383, 0
      %v447 = vsel %vm400, %v384, 0
      %449 = vmatprep.subr.bf16.mxu0 0
      %450 = vmatpush1.bf16.msra.mxu0 %v398
      %451 = vmatprep.subr.bf16.mxu0 0
      %452 = vmatpush1.bf16.msra.mxu0 0
      %453 = vmatprep.subr.bf16.mxu0 0
      %454 = vmatpush1.bf16.msra.mxu0 0
      %455 = vmatprep.subr.bf16.mxu0 0
      %456 = vmatpush1.bf16.msra.mxu0 0
      %457 = vmatprep.subr.bf16.mxu0 0
      %458 = vmatpush1.bf16.msra.mxu0 0
      %459 = vmatprep.subr.bf16.mxu0 0
      %460 = vmatpush1.bf16.msra.mxu0 0
      %461 = vmatprep.subr.bf16.mxu0 0
      %462 = vmatpush1.bf16.msra.mxu0 0
      %463 = vmatprep.subr.bf16.mxu0 0
      %464 = vmatpush1.bf16.msra.mxu0 0
      %465 = vmatprep.subr.bf16.mxu0 0
      %466 = vmatpush1.bf16.msra.mxu0 0
      %467 = vmatprep.subr.bf16.mxu0 0
      %468 = vmatpush1.bf16.msra.mxu0 0
      %469 = vmatprep.subr.bf16.mxu0 0
      %470 = vmatpush1.bf16.msra.mxu0 0
      %471 = vmatprep.subr.bf16.mxu0 0
      %472 = vmatpush1.bf16.msra.mxu0 0
      %473 = vmatprep.subr.bf16.mxu0 0
      %474 = vmatpush1.bf16.msra.mxu0 0
      %475 = vmatprep.subr.bf16.mxu0 0
      %476 = vmatpush1.bf16.msra.mxu0 0
      %477 = vmatprep.subr.bf16.mxu0 0
      %478 = vmatpush1.bf16.msra.mxu0 0
      %479 = vmatprep.subr.bf16.mxu0 0
      %480 = vmatpush1.bf16.msra.mxu0 0
      %481 = vmatprep.mubr.bf16.mxu0 0
      %482 = vmatmul.mubr.bf16.gmra.mrb[0].mxu0 %v402
      %v483 = vpop.f32.mrb[0].mxu0
      %v484 = vadd.f32 %v392, %v483
      %v485 = vpop.f32.mrb[0].mxu0
      %v486 = vpop.f32.mrb[0].mxu0
      %v487 = vadd.f32 %v392, %v486
      %v488 = vpop.f32.mrb[0].mxu0
      %489 = vmatprep.mubr.bf16.mxu0 0
      %490 = vmatmul.mubr.bf16.gmra.mrb[0].mxu0 %v405
      %v491 = vpop.f32.mrb[0].mxu0
      %v492 = vadd.f32 %v392, %v491
      %v493 = vpop.f32.mrb[0].mxu0
      %v494 = vpop.f32.mrb[0].mxu0
      %v495 = vadd.f32 %v392, %v494
      %v496 = vpop.f32.mrb[0].mxu0
      %497 = vmatprep.mubr.bf16.mxu0 0
      %498 = vmatmul.mubr.bf16.gmra.mrb[0].mxu0 %v408
      %v499 = vpop.f32.mrb[0].mxu0
      %v500 = vadd.f32 %v392, %v499
      %v501 = vpop.f32.mrb[0].mxu0
      %v502 = vpop.f32.mrb[0].mxu0
      %v503 = vadd.f32 %v392, %v502
      %v504 = vpop.f32.mrb[0].mxu0
      %505 = vmatprep.mubr.bf16.mxu0 0
      %506 = vmatmul.mubr.bf16.gmra.mrb[0].mxu0 %v411
      %v507 = vpop.f32.mrb[0].mxu0
      %v508 = vadd.f32 %v392, %v507
      %v509 = vpop.f32.mrb[0].mxu0
      %v510 = vpop.f32.mrb[0].mxu0
      %v511 = vadd.f32 %v392, %v510
      %v512 = vpop.f32.mrb[0].mxu0
      %513 = vmatprep.mubr.bf16.mxu0 0
      %514 = vmatmul.mubr.bf16.gmra.mrb[0].mxu0 %v414
      %v515 = vpop.f32.mrb[0].mxu0
      %v516 = vadd.f32 %v392, %v515
      %v517 = vpop.f32.mrb[0].mxu0
      %v518 = vpop.f32.mrb[0].mxu0
      %v519 = vadd.f32 %v392, %v518
      %v520 = vpop.f32.mrb[0].mxu0
      %521 = vmatprep.mubr.bf16.mxu0 0
      %522 = vmatmul.mubr.bf16.gmra.mrb[0].mxu0 %v417
      %v523 = vpop.f32.mrb[0].mxu0
      %v524 = vadd.f32 %v392, %v523
      %v525 = vpop.f32.mrb[0].mxu0
      %v526 = vpop.f32.mrb[0].mxu0
      %v527 = vadd.f32 %v392, %v526
      %v528 = vpop.f32.mrb[0].mxu0
      %529 = vmatprep.mubr.bf16.mxu0 0
      %530 = vmatmul.mubr.bf16.gmra.mrb[0].mxu0 %v420
      %v531 = vpop.f32.mrb[0].mxu0
      %v532 = vadd.f32 %v392, %v531
      %v533 = vpop.f32.mrb[0].mxu0
      %v534 = vpop.f32.mrb[0].mxu0
      %v535 = vadd.f32 %v392, %v534
      %v536 = vpop.f32.mrb[0].mxu0
      %537 = vmatprep.mubr.bf16.mxu0 0
      %538 = vmatmul.mubr.bf16.gmra.mrb[0].mxu0 %v423
      %v539 = vpop.f32.mrb[0].mxu0
      %v540 = vadd.f32 %v392, %v539
      %v541 = vpop.f32.mrb[0].mxu0
      %v542 = vpop.f32.mrb[0].mxu0
      %v543 = vadd.f32 %v392, %v542
      %v544 = vpop.f32.mrb[0].mxu0
      %545 = vmatprep.mubr.bf16.mxu0 0
      %546 = vmatmul.mubr.bf16.gmra.mrb[0].mxu0 %v426
      %v547 = vpop.f32.mrb[0].mxu0
      %v548 = vadd.f32 %v392, %v547
      %v549 = vpop.f32.mrb[0].mxu0
      %v550 = vpop.f32.mrb[0].mxu0
      %v551 = vadd.f32 %v392, %v550
      %v552 = vpop.f32.mrb[0].mxu0
      %553 = vmatprep.mubr.bf16.mxu0 0
      %554 = vmatmul.mubr.bf16.gmra.mrb[0].mxu0 %v429
      %v555 = vpop.f32.mrb[0].mxu0
      %v556 = vadd.f32 %v392, %v555
      %v557 = vpop.f32.mrb[0].mxu0
      %v558 = vpop.f32.mrb[0].mxu0
      %v559 = vadd.f32 %v392, %v558
      %v560 = vpop.f32.mrb[0].mxu0
      %561 = vmatprep.mubr.bf16.mxu0 0
      %562 = vmatmul.mubr.bf16.gmra.mrb[0].mxu0 %v432
      %v563 = vpop.f32.mrb[0].mxu0
      %v564 = vadd.f32 %v392, %v563
      %v565 = vpop.f32.mrb[0].mxu0
      %v566 = vpop.f32.mrb[0].mxu0
      %v567 = vadd.f32 %v392, %v566
      %v568 = vpop.f32.mrb[0].mxu0
      %569 = vmatprep.mubr.bf16.mxu0 0
      %570 = vmatmul.mubr.bf16.gmra.mrb[0].mxu0 %v435
      %v571 = vpop.f32.mrb[0].mxu0
      %v572 = vadd.f32 %v392, %v571
      %v573 = vpop.f32.mrb[0].mxu0
      %v574 = vpop.f32.mrb[0].mxu0
      %v575 = vadd.f32 %v392, %v574
      %v576 = vpop.f32.mrb[0].mxu0
      %577 = vmatprep.mubr.bf16.mxu0 0
      %578 = vmatmul.mubr.bf16.gmra.mrb[0].mxu0 %v438
      %v579 = vpop.f32.mrb[0].mxu0
      %v580 = vadd.f32 %v392, %v579
      %v581 = vpop.f32.mrb[0].mxu0
      %v582 = vpop.f32.mrb[0].mxu0
      %v583 = vadd.f32 %v392, %v582
      %v584 = vpop.f32.mrb[0].mxu0
      %585 = vmatprep.mubr.bf16.mxu0 0
      %586 = vmatmul.mubr.bf16.gmra.mrb[0].mxu0 %v441
      %v587 = vpop.f32.mrb[0].mxu0
      %v588 = vadd.f32 %v392, %v587
      %v589 = vpop.f32.mrb[0].mxu0
      %v590 = vpop.f32.mrb[0].mxu0
      %v591 = vadd.f32 %v392, %v590
      %v592 = vpop.f32.mrb[0].mxu0
      %593 = vmatprep.mubr.bf16.mxu0 0
      %594 = vmatmul.mubr.bf16.gmra.mrb[0].mxu0 %v444
      %v595 = vpop.f32.mrb[0].mxu0
      %v596 = vadd.f32 %v392, %v595
      %v597 = vpop.f32.mrb[0].mxu0
      %v598 = vpop.f32.mrb[0].mxu0
      %v599 = vadd.f32 %v392, %v598
      %v600 = vpop.f32.mrb[0].mxu0
      %601 = vmatprep.mubr.bf16.mxu0 0
      %602 = vmatmul.mubr.bf16.gmra.mrb[0].mxu0 %v447
      %v603 = vpop.f32.mrb[0].mxu0
      %v604 = vadd.f32 %v392, %v603
      %v605 = vpop.f32.mrb[0].mxu0
      %v606 = vpop.f32.mrb[0].mxu0
      %v607 = vadd.f32 %v392, %v606
      %v608 = vpop.f32.mrb[0].mxu0
      %609 = vdwg.mxu0
      %v610 = vmax.f32 %v484, 0.0
      %v611 = vmax.f32 %v487, 0.0
      %v612 = vmax.f32 %v492, 0.0
      %v613 = vmax.f32 %v495, 0.0
      %v614 = vmax.f32 %v500, 0.0
      %v615 = vmax.f32 %v503, 0.0
      %v616 = vmax.f32 %v508, 0.0
      %v617 = vmax.f32 %v511, 0.0
      %v618 = vmax.f32 %v516, 0.0
      %v619 = vmax.f32 %v519, 0.0
      %v620 = vmax.f32 %v524, 0.0
      %v621 = vmax.f32 %v527, 0.0
      %v622 = vmax.f32 %v532, 0.0
      %v623 = vmax.f32 %v535, 0.0
      %v624 = vmax.f32 %v540, 0.0
      %v625 = vmax.f32 %v543, 0.0
      %v626 = vmax.f32 %v548, 0.0
      %v627 = vmax.f32 %v551, 0.0
      %v628 = vmax.f32 %v556, 0.0
      %v629 = vmax.f32 %v559, 0.0
      %v630 = vmax.f32 %v564, 0.0
      %v631 = vmax.f32 %v567, 0.0
      %v632 = vmax.f32 %v572, 0.0
      %v633 = vmax.f32 %v575, 0.0
      %v634 = vmax.f32 %v580, 0.0
      %v635 = vmax.f32 %v583, 0.0
      %v636 = vmax.f32 %v588, 0.0
      %v637 = vmax.f32 %v591, 0.0
      %v638 = vmax.f32 %v596, 0.0
      %v639 = vmax.f32 %v599, 0.0
      %v640 = vmax.f32 %v604, 0.0
      %v641 = vmax.f32 %v607, 0.0
      %v642 = vpack.c.bf16 %v611, %v610
      %v643 = vpack.c.bf16 %v613, %v612
      %v644 = vpack.c.bf16 %v615, %v614
      %v645 = vpack.c.bf16 %v617, %v616
      %v646 = vpack.c.bf16 %v619, %v618
      %v647 = vpack.c.bf16 %v621, %v620
      %v648 = vpack.c.bf16 %v623, %v622
      %v649 = vpack.c.bf16 %v625, %v624
      %v650 = vpack.c.bf16 %v627, %v626
      %v651 = vpack.c.bf16 %v629, %v628
      %v652 = vpack.c.bf16 %v631, %v630
      %v653 = vpack.c.bf16 %v633, %v632
      %v654 = vpack.c.bf16 %v635, %v634
      %v655 = vpack.c.bf16 %v637, %v636
      %v656 = vpack.c.bf16 %v639, %v638
      %v657 = vpack.c.bf16 %v641, %v640
      %v658 = vld [vmem:[%s3] sm:$0xff]
      %v659 = vld [vmem:[%s3 + $0x8] sm:$0xff]
      %v660 = vld [vmem:[%s3 + $0x10] sm:$0xff]
      %v661 = vld [vmem:[%s3 + $0x18] sm:$0xff]
      %v662 = vld [vmem:[%s3 + $0x20] sm:$0xff]
      %v663 = vld [vmem:[%s3 + $0x28] sm:$0xff]
      %v664 = vld [vmem:[%s3 + $0x30] sm:$0xff]
      %v665 = vld [vmem:[%s3 + $0x38] sm:$0xff]
      %v666 = vld [vmem:[%s3 + $0x40] sm:$0xff]
      %v667 = vld [vmem:[%s3 + $0x48] sm:$0xff]
      %v668 = vld [vmem:[%s3 + $0x50] sm:$0xff]
      %v669 = vld [vmem:[%s3 + $0x58] sm:$0xff]
      %v670 = vld [vmem:[%s3 + $0x60] sm:$0xff]
      %v671 = vld [vmem:[%s3 + $0x68] sm:$0xff]
      %v672 = vld [vmem:[%s3 + $0x70] sm:$0xff]
      %v673 = vld [vmem:[%s3 + $0x78] sm:$0xff]
      %v674 = vld [vmem:[%s4] sm:$0x3]
      %v676 = vlaneseq
      %v677 = vshrl.u32 %v676, 7
      %v678 = vsub.s32 0, %v677
      %v679 = vrot.slane %v674, %v678
      %v680 = vlaneseq
      %v681 = vshrl.u32 %v680, 7
      %v682 = vsub.s32 1, %v681
      %v683 = vrot.slane %v674, %v682
      %v702 = vunpack.c.l.b16 %v658
      %v703 = vunpack.c.h.b16 %v658
      %v704 = vunpack.c.l.b16 %v659
      %v705 = vunpack.c.h.b16 %v659
      %v706 = vunpack.c.l.b16 %v660
      %v707 = vunpack.c.h.b16 %v660
      %v708 = vunpack.c.l.b16 %v661
      %v709 = vunpack.c.h.b16 %v661
      %v710 = vunpack.c.l.b16 %v662
      %v711 = vunpack.c.h.b16 %v662
      %v712 = vunpack.c.l.b16 %v663
      %v713 = vunpack.c.h.b16 %v663
      %v714 = vunpack.c.l.b16 %v664
      %v715 = vunpack.c.h.b16 %v664
      %v716 = vunpack.c.l.b16 %v665
      %v717 = vunpack.c.h.b16 %v665
      %v718 = vunpack.c.l.b16 %v666
      %v719 = vunpack.c.h.b16 %v666
      %v720 = vunpack.c.l.b16 %v667
      %v721 = vunpack.c.h.b16 %v667
      %v722 = vunpack.c.l.b16 %v668
      %v723 = vunpack.c.h.b16 %v668
      %v724 = vunpack.c.l.b16 %v669
      %v725 = vunpack.c.h.b16 %v669
      %v726 = vunpack.c.l.b16 %v670
      %v727 = vunpack.c.h.b16 %v670
      %v728 = vunpack.c.l.b16 %v671
      %v729 = vunpack.c.h.b16 %v671
      %v730 = vunpack.c.l.b16 %v672
      %v731 = vunpack.c.h.b16 %v672
      %v732 = vunpack.c.l.b16 %v673
      %v733 = vunpack.c.h.b16 %v673
      %v734 = vpack.c.b16 %v704, %v702
      %v735 = vpack.c.b16 %v705, %v703
      %v736 = vpack.c.b16 %v708, %v706
      %v737 = vpack.c.b16 %v709, %v707
      %v738 = vpack.c.b16 %v712, %v710
      %v739 = vpack.c.b16 %v713, %v711
      %v740 = vpack.c.b16 %v716, %v714
      %v741 = vpack.c.b16 %v717, %v715
      %v742 = vpack.c.b16 %v720, %v718
      %v743 = vpack.c.b16 %v721, %v719
      %v744 = vpack.c.b16 %v724, %v722
      %v745 = vpack.c.b16 %v725, %v723
      %v746 = vpack.c.b16 %v728, %v726
      %v747 = vpack.c.b16 %v729, %v727
      %v748 = vpack.c.b16 %v732, %v730
      %v749 = vpack.c.b16 %v733, %v731
      %766 = vmatprep.subr.bf16.mxu0 %v735
      %767 = vmatpush1.bf16.msra.mxu0 %v734
      %768 = vmatprep.subr.bf16.mxu0 %v737
      %769 = vmatpush1.bf16.msra.mxu0 %v736
      %770 = vmatprep.subr.bf16.mxu0 %v739
      %771 = vmatpush1.bf16.msra.mxu0 %v738
      %772 = vmatprep.subr.bf16.mxu0 %v741
      %773 = vmatpush1.bf16.msra.mxu0 %v740
      %774 = vmatprep.subr.bf16.mxu0 %v743
      %775 = vmatpush1.bf16.msra.mxu0 %v742
      %776 = vmatprep.subr.bf16.mxu0 %v745
      %777 = vmatpush1.bf16.msra.mxu0 %v744
      %778 = vmatprep.subr.bf16.mxu0 %v747
      %779 = vmatpush1.bf16.msra.mxu0 %v746
      %780 = vmatprep.subr.bf16.mxu0 %v749
      %781 = vmatpush1.bf16.msra.mxu0 %v748
      %782 = vmatprep.subr.bf16.mxu0 0
      %783 = vmatpush1.bf16.msra.mxu0 0
      %784 = vmatprep.subr.bf16.mxu0 0
      %785 = vmatpush1.bf16.msra.mxu0 0
      %786 = vmatprep.subr.bf16.mxu0 0
      %787 = vmatpush1.bf16.msra.mxu0 0
      %788 = vmatprep.subr.bf16.mxu0 0
      %789 = vmatpush1.bf16.msra.mxu0 0
      %790 = vmatprep.subr.bf16.mxu0 0
      %791 = vmatpush1.bf16.msra.mxu0 0
      %792 = vmatprep.subr.bf16.mxu0 0
      %793 = vmatpush1.bf16.msra.mxu0 0
      %794 = vmatprep.subr.bf16.mxu0 0
      %795 = vmatpush1.bf16.msra.mxu0 0
      %796 = vmatprep.subr.bf16.mxu0 0
      %797 = vmatpush1.bf16.msra.mxu0 0
      %798 = vmatprep.mubr.bf16.mxu0 0
      %799 = vmatmul.mubr.bf16.gmra.mrb[0].mxu0 %v642
      %v800 = vpop.f32.mrb[0].mxu0
      %v801 = vadd.f32 %v679, %v800
      %v802 = vpop.f32.mrb[0].mxu0
      %v803 = vadd.f32 %v683, %v802
      %v804 = vpop.f32.mrb[0].mxu0
      %v805 = vadd.f32 %v679, %v804
      %v806 = vpop.f32.mrb[0].mxu0
      %v807 = vadd.f32 %v683, %v806
      %808 = vmatprep.mubr.bf16.mxu0 0
      %809 = vmatmul.mubr.bf16.gmra.mrb[0].mxu0 %v643
      %v810 = vpop.f32.mrb[0].mxu0
      %v811 = vadd.f32 %v679, %v810
      %v812 = vpop.f32.mrb[0].mxu0
      %v813 = vadd.f32 %v683, %v812
      %v814 = vpop.f32.mrb[0].mxu0
      %v815 = vadd.f32 %v679, %v814
      %v816 = vpop.f32.mrb[0].mxu0
      %v817 = vadd.f32 %v683, %v816
      %818 = vmatprep.mubr.bf16.mxu0 0
      %819 = vmatmul.mubr.bf16.gmra.mrb[0].mxu0 %v644
      %v820 = vpop.f32.mrb[0].mxu0
      %v821 = vadd.f32 %v679, %v820
      %v822 = vpop.f32.mrb[0].mxu0
      %v823 = vadd.f32 %v683, %v822
      %v824 = vpop.f32.mrb[0].mxu0
      %v825 = vadd.f32 %v679, %v824
      %v826 = vpop.f32.mrb[0].mxu0
      %v827 = vadd.f32 %v683, %v826
      %828 = vmatprep.mubr.bf16.mxu0 0
      %829 = vmatmul.mubr.bf16.gmra.mrb[0].mxu0 %v645
      %v830 = vpop.f32.mrb[0].mxu0
      %v831 = vadd.f32 %v679, %v830
      %v832 = vpop.f32.mrb[0].mxu0
      %v833 = vadd.f32 %v683, %v832
      %v834 = vpop.f32.mrb[0].mxu0
      %v835 = vadd.f32 %v679, %v834
      %v836 = vpop.f32.mrb[0].mxu0
      %v837 = vadd.f32 %v683, %v836
      %838 = vmatprep.mubr.bf16.mxu0 0
      %839 = vmatmul.mubr.bf16.gmra.mrb[0].mxu0 %v646
      %v840 = vpop.f32.mrb[0].mxu0
      %v841 = vadd.f32 %v679, %v840
      %v842 = vpop.f32.mrb[0].mxu0
      %v843 = vadd.f32 %v683, %v842
      %v844 = vpop.f32.mrb[0].mxu0
      %v845 = vadd.f32 %v679, %v844
      %v846 = vpop.f32.mrb[0].mxu0
      %v847 = vadd.f32 %v683, %v846
      %848 = vmatprep.mubr.bf16.mxu0 0
      %849 = vmatmul.mubr.bf16.gmra.mrb[0].mxu0 %v647
      %v850 = vpop.f32.mrb[0].mxu0
      %v851 = vadd.f32 %v679, %v850
      %v852 = vpop.f32.mrb[0].mxu0
      %v853 = vadd.f32 %v683, %v852
      %v854 = vpop.f32.mrb[0].mxu0
      %v855 = vadd.f32 %v679, %v854
      %v856 = vpop.f32.mrb[0].mxu0
      %v857 = vadd.f32 %v683, %v856
      %858 = vmatprep.mubr.bf16.mxu0 0
      %859 = vmatmul.mubr.bf16.gmra.mrb[0].mxu0 %v648
      %v860 = vpop.f32.mrb[0].mxu0
      %v861 = vadd.f32 %v679, %v860
      %v862 = vpop.f32.mrb[0].mxu0
      %v863 = vadd.f32 %v683, %v862
      %v864 = vpop.f32.mrb[0].mxu0
      %v865 = vadd.f32 %v679, %v864
      %v866 = vpop.f32.mrb[0].mxu0
      %v867 = vadd.f32 %v683, %v866
      %868 = vmatprep.mubr.bf16.mxu0 0
      %869 = vmatmul.mubr.bf16.gmra.mrb[0].mxu0 %v649
      %v870 = vpop.f32.mrb[0].mxu0
      %v871 = vadd.f32 %v679, %v870
      %v872 = vpop.f32.mrb[0].mxu0
      %v873 = vadd.f32 %v683, %v872
      %v874 = vpop.f32.mrb[0].mxu0
      %v875 = vadd.f32 %v679, %v874
      %v876 = vpop.f32.mrb[0].mxu0
      %v877 = vadd.f32 %v683, %v876
      %878 = vmatprep.mubr.bf16.mxu0 0
      %879 = vmatmul.mubr.bf16.gmra.mrb[0].mxu0 %v650
      %v880 = vpop.f32.mrb[0].mxu0
      %v881 = vadd.f32 %v679, %v880
      %v882 = vpop.f32.mrb[0].mxu0
      %v883 = vadd.f32 %v683, %v882
      %v884 = vpop.f32.mrb[0].mxu0
      %v885 = vadd.f32 %v679, %v884
      %v886 = vpop.f32.mrb[0].mxu0
      %v887 = vadd.f32 %v683, %v886
      %888 = vmatprep.mubr.bf16.mxu0 0
      %889 = vmatmul.mubr.bf16.gmra.mrb[0].mxu0 %v651
      %v890 = vpop.f32.mrb[0].mxu0
      %v891 = vadd.f32 %v679, %v890
      %v892 = vpop.f32.mrb[0].mxu0
      %v893 = vadd.f32 %v683, %v892
      %v894 = vpop.f32.mrb[0].mxu0
      %v895 = vadd.f32 %v679, %v894
      %v896 = vpop.f32.mrb[0].mxu0
      %v897 = vadd.f32 %v683, %v896
      %898 = vmatprep.mubr.bf16.mxu0 0
      %899 = vmatmul.mubr.bf16.gmra.mrb[0].mxu0 %v652
      %v900 = vpop.f32.mrb[0].mxu0
      %v901 = vadd.f32 %v679, %v900
      %v902 = vpop.f32.mrb[0].mxu0
      %v903 = vadd.f32 %v683, %v902
      %v904 = vpop.f32.mrb[0].mxu0
      %v905 = vadd.f32 %v679, %v904
      %v906 = vpop.f32.mrb[0].mxu0
      %v907 = vadd.f32 %v683, %v906
      %908 = vmatprep.mubr.bf16.mxu0 0
      %909 = vmatmul.mubr.bf16.gmra.mrb[0].mxu0 %v653
      %v910 = vpop.f32.mrb[0].mxu0
      %v911 = vadd.f32 %v679, %v910
      %v912 = vpop.f32.mrb[0].mxu0
      %v913 = vadd.f32 %v683, %v912
      %v914 = vpop.f32.mrb[0].mxu0
      %v915 = vadd.f32 %v679, %v914
      %v916 = vpop.f32.mrb[0].mxu0
      %v917 = vadd.f32 %v683, %v916
      %918 = vmatprep.mubr.bf16.mxu0 0
      %919 = vmatmul.mubr.bf16.gmra.mrb[0].mxu0 %v654
      %v920 = vpop.f32.mrb[0].mxu0
      %v921 = vadd.f32 %v679, %v920
      %v922 = vpop.f32.mrb[0].mxu0
      %v923 = vadd.f32 %v683, %v922
      %v924 = vpop.f32.mrb[0].mxu0
      %v925 = vadd.f32 %v679, %v924
      %v926 = vpop.f32.mrb[0].mxu0
      %v927 = vadd.f32 %v683, %v926
      %928 = vmatprep.mubr.bf16.mxu0 0
      %929 = vmatmul.mubr.bf16.gmra.mrb[0].mxu0 %v655
      %v930 = vpop.f32.mrb[0].mxu0
      %v931 = vadd.f32 %v679, %v930
      %v932 = vpop.f32.mrb[0].mxu0
      %v933 = vadd.f32 %v683, %v932
      %v934 = vpop.f32.mrb[0].mxu0
      %v935 = vadd.f32 %v679, %v934
      %v936 = vpop.f32.mrb[0].mxu0
      %v937 = vadd.f32 %v683, %v936
      %938 = vmatprep.mubr.bf16.mxu0 0
      %939 = vmatmul.mubr.bf16.gmra.mrb[0].mxu0 %v656
      %v940 = vpop.f32.mrb[0].mxu0
      %v941 = vadd.f32 %v679, %v940
      %v942 = vpop.f32.mrb[0].mxu0
      %v943 = vadd.f32 %v683, %v942
      %v944 = vpop.f32.mrb[0].mxu0
      %v945 = vadd.f32 %v679, %v944
      %v946 = vpop.f32.mrb[0].mxu0
      %v947 = vadd.f32 %v683, %v946
      %948 = vmatprep.mubr.bf16.mxu0 0
      %949 = vmatmul.mubr.bf16.gmra.mrb[0].mxu0 %v657
      %v950 = vpop.f32.mrb[0].mxu0
      %v951 = vadd.f32 %v679, %v950
      %v952 = vpop.f32.mrb[0].mxu0
      %v953 = vadd.f32 %v683, %v952
      %v954 = vpop.f32.mrb[0].mxu0
      %v955 = vadd.f32 %v679, %v954
      %v956 = vpop.f32.mrb[0].mxu0
      %v957 = vadd.f32 %v683, %v956
      %958 = vdwg.mxu0
      %v959 = vmax.f32 %v801, 0.0
      %v960 = vmax.f32 %v803, 0.0
      %v961 = vmax.f32 %v805, 0.0
      %v962 = vmax.f32 %v807, 0.0
      %v963 = vmax.f32 %v811, 0.0
      %v964 = vmax.f32 %v813, 0.0
      %v965 = vmax.f32 %v815, 0.0
      %v966 = vmax.f32 %v817, 0.0
      %v967 = vmax.f32 %v821, 0.0
      %v968 = vmax.f32 %v823, 0.0
      %v969 = vmax.f32 %v825, 0.0
      %v970 = vmax.f32 %v827, 0.0
      %v971 = vmax.f32 %v831, 0.0
      %v972 = vmax.f32 %v833, 0.0
      %v973 = vmax.f32 %v835, 0.0
      %v974 = vmax.f32 %v837, 0.0
      %v975 = vmax.f32 %v841, 0.0
      %v976 = vmax.f32 %v843, 0.0
      %v977 = vmax.f32 %v845, 0.0
      %v978 = vmax.f32 %v847, 0.0
      %v979 = vmax.f32 %v851, 0.0
      %v980 = vmax.f32 %v853, 0.0
      %v981 = vmax.f32 %v855, 0.0
      %v982 = vmax.f32 %v857, 0.0
      %v983 = vmax.f32 %v861, 0.0
      %v984 = vmax.f32 %v863, 0.0
      %v985 = vmax.f32 %v865, 0.0
      %v986 = vmax.f32 %v867, 0.0
      %v987 = vmax.f32 %v871, 0.0
      %v988 = vmax.f32 %v873, 0.0
      %v989 = vmax.f32 %v875, 0.0
      %v990 = vmax.f32 %v877, 0.0
      %v991 = vmax.f32 %v881, 0.0
      %v992 = vmax.f32 %v883, 0.0
      %v993 = vmax.f32 %v885, 0.0
      %v994 = vmax.f32 %v887, 0.0
      %v995 = vmax.f32 %v891, 0.0
      %v996 = vmax.f32 %v893, 0.0
      %v997 = vmax.f32 %v895, 0.0
      %v998 = vmax.f32 %v897, 0.0
      %v999 = vmax.f32 %v901, 0.0
      %v1000 = vmax.f32 %v903, 0.0
      %v1001 = vmax.f32 %v905, 0.0
      %v1002 = vmax.f32 %v907, 0.0
      %v1003 = vmax.f32 %v911, 0.0
      %v1004 = vmax.f32 %v913, 0.0
      %v1005 = vmax.f32 %v915, 0.0
      %v1006 = vmax.f32 %v917, 0.0
      %v1007 = vmax.f32 %v921, 0.0
      %v1008 = vmax.f32 %v923, 0.0
      %v1009 = vmax.f32 %v925, 0.0
      %v1010 = vmax.f32 %v927, 0.0
      %v1011 = vmax.f32 %v931, 0.0
      %v1012 = vmax.f32 %v933, 0.0
      %v1013 = vmax.f32 %v935, 0.0
      %v1014 = vmax.f32 %v937, 0.0
      %v1015 = vmax.f32 %v941, 0.0
      %v1016 = vmax.f32 %v943, 0.0
      %v1017 = vmax.f32 %v945, 0.0
      %v1018 = vmax.f32 %v947, 0.0
      %v1019 = vmax.f32 %v951, 0.0
      %v1020 = vmax.f32 %v953, 0.0
      %v1021 = vmax.f32 %v955, 0.0
      %v1022 = vmax.f32 %v957, 0.0
      %v1023 = vpack.c.bf16 %v961, %v959
      %v1024 = vpack.c.bf16 %v962, %v960
      %v1025 = vpack.c.bf16 %v965, %v963
      %v1026 = vpack.c.bf16 %v966, %v964
      %v1027 = vpack.c.bf16 %v969, %v967
      %v1028 = vpack.c.bf16 %v970, %v968
      %v1029 = vpack.c.bf16 %v973, %v971
      %v1030 = vpack.c.bf16 %v974, %v972
      %v1031 = vpack.c.bf16 %v977, %v975
      %v1032 = vpack.c.bf16 %v978, %v976
      %v1033 = vpack.c.bf16 %v981, %v979
      %v1034 = vpack.c.bf16 %v982, %v980
      %v1035 = vpack.c.bf16 %v985, %v983
      %v1036 = vpack.c.bf16 %v986, %v984
      %v1037 = vpack.c.bf16 %v989, %v987
      %v1038 = vpack.c.bf16 %v990, %v988
      %v1039 = vpack.c.bf16 %v993, %v991
      %v1040 = vpack.c.bf16 %v994, %v992
      %v1041 = vpack.c.bf16 %v997, %v995
      %v1042 = vpack.c.bf16 %v998, %v996
      %v1043 = vpack.c.bf16 %v1001, %v999
      %v1044 = vpack.c.bf16 %v1002, %v1000
      %v1045 = vpack.c.bf16 %v1005, %v1003
      %v1046 = vpack.c.bf16 %v1006, %v1004
      %v1047 = vpack.c.bf16 %v1009, %v1007
      %v1048 = vpack.c.bf16 %v1010, %v1008
      %v1049 = vpack.c.bf16 %v1013, %v1011
      %v1050 = vpack.c.bf16 %v1014, %v1012
      %v1051 = vpack.c.bf16 %v1017, %v1015
      %v1052 = vpack.c.bf16 %v1018, %v1016
      %v1053 = vpack.c.bf16 %v1021, %v1019
      %v1054 = vpack.c.bf16 %v1022, %v1020
      %v1055 = vld [vmem:[%s5] sm:$0xf]
      %v1056 = vld [vmem:[%s5 + $0x4] sm:$0xf]
      %v1057 = vld [vmem:[%s5 + $0x8] sm:$0xf]
      %v1058 = vld [vmem:[%s5 + $0xc] sm:$0xf]
      %v1059 = vld [vmem:[%s5 + $0x10] sm:$0xf]
      %v1060 = vld [vmem:[%s5 + $0x14] sm:$0xf]
      %v1061 = vld [vmem:[%s5 + $0x18] sm:$0xf]
      %v1062 = vld [vmem:[%s5 + $0x1c] sm:$0xf]
      %v1063 = vld [vmem:[%s5 + $0x20] sm:$0xf]
      %v1064 = vld [vmem:[%s5 + $0x24] sm:$0xf]
      %v1065 = vld [vmem:[%s5 + $0x28] sm:$0xf]
      %v1066 = vld [vmem:[%s5 + $0x2c] sm:$0xf]
      %v1067 = vld [vmem:[%s5 + $0x30] sm:$0xf]
      %v1068 = vld [vmem:[%s5 + $0x34] sm:$0xf]
      %v1069 = vld [vmem:[%s5 + $0x38] sm:$0xf]
      %v1070 = vld [vmem:[%s5 + $0x3c] sm:$0xf]
      %v1071 = vld [vmem:[%s5 + $0x40] sm:$0xf]
      %v1072 = vld [vmem:[%s5 + $0x44] sm:$0xf]
      %v1073 = vld [vmem:[%s5 + $0x48] sm:$0xf]
      %v1074 = vld [vmem:[%s5 + $0x4c] sm:$0xf]
      %v1075 = vld [vmem:[%s5 + $0x50] sm:$0xf]
      %v1076 = vld [vmem:[%s5 + $0x54] sm:$0xf]
      %v1077 = vld [vmem:[%s5 + $0x58] sm:$0xf]
      %v1078 = vld [vmem:[%s5 + $0x5c] sm:$0xf]
      %v1079 = vld [vmem:[%s5 + $0x60] sm:$0xf]
      %v1080 = vld [vmem:[%s5 + $0x64] sm:$0xf]
      %v1081 = vld [vmem:[%s5 + $0x68] sm:$0xf]
      %v1082 = vld [vmem:[%s5 + $0x6c] sm:$0xf]
      %v1083 = vld [vmem:[%s5 + $0x70] sm:$0xf]
      %v1084 = vld [vmem:[%s5 + $0x74] sm:$0xf]
      %v1085 = vld [vmem:[%s5 + $0x78] sm:$0xf]
      %v1086 = vld [vmem:[%s5 + $0x7c] sm:$0xf]
      %v1087 = vld [vmem:[%s6] sm:$0x1]
      %v1089 = vlaneseq
      %v1090 = vshrl.u32 %v1089, 7
      %v1091 = vsub.s32 0, %v1090
      %v1092 = vrot.slane %v1087, %v1091
      %v1126 = vunpack.c.l.b16 %v1055
      %v1127 = vunpack.c.l.b16 %v1056
      %v1128 = vunpack.c.l.b16 %v1057
      %v1129 = vunpack.c.l.b16 %v1058
      %v1130 = vunpack.c.l.b16 %v1059
      %v1131 = vunpack.c.l.b16 %v1060
      %v1132 = vunpack.c.l.b16 %v1061
      %v1133 = vunpack.c.l.b16 %v1062
      %v1134 = vunpack.c.l.b16 %v1063
      %v1135 = vunpack.c.l.b16 %v1064
      %v1136 = vunpack.c.l.b16 %v1065
      %v1137 = vunpack.c.l.b16 %v1066
      %v1138 = vunpack.c.l.b16 %v1067
      %v1139 = vunpack.c.l.b16 %v1068
      %v1140 = vunpack.c.l.b16 %v1069
      %v1141 = vunpack.c.l.b16 %v1070
      %v1142 = vunpack.c.l.b16 %v1071
      %v1143 = vunpack.c.l.b16 %v1072
      %v1144 = vunpack.c.l.b16 %v1073
      %v1145 = vunpack.c.l.b16 %v1074
      %v1146 = vunpack.c.l.b16 %v1075
      %v1147 = vunpack.c.l.b16 %v1076
      %v1148 = vunpack.c.l.b16 %v1077
      %v1149 = vunpack.c.l.b16 %v1078
      %v1150 = vunpack.c.l.b16 %v1079
      %v1151 = vunpack.c.l.b16 %v1080
      %v1152 = vunpack.c.l.b16 %v1081
      %v1153 = vunpack.c.l.b16 %v1082
      %v1154 = vunpack.c.l.b16 %v1083
      %v1155 = vunpack.c.l.b16 %v1084
      %v1156 = vunpack.c.l.b16 %v1085
      %v1157 = vunpack.c.l.b16 %v1086
      %v1158 = vpack.c.b16 %v1127, %v1126
      %v1159 = vpack.c.b16 %v1129, %v1128
      %v1160 = vpack.c.b16 %v1131, %v1130
      %v1161 = vpack.c.b16 %v1133, %v1132
      %v1162 = vpack.c.b16 %v1135, %v1134
      %v1163 = vpack.c.b16 %v1137, %v1136
      %v1164 = vpack.c.b16 %v1139, %v1138
      %v1165 = vpack.c.b16 %v1141, %v1140
      %v1166 = vpack.c.b16 %v1143, %v1142
      %v1167 = vpack.c.b16 %v1145, %v1144
      %v1168 = vpack.c.b16 %v1147, %v1146
      %v1169 = vpack.c.b16 %v1149, %v1148
      %v1170 = vpack.c.b16 %v1151, %v1150
      %v1171 = vpack.c.b16 %v1153, %v1152
      %v1172 = vpack.c.b16 %v1155, %v1154
      %v1173 = vpack.c.b16 %v1157, %v1156
      %1190 = vmatprep.subr.bf16.mxu0 0
      %1191 = vmatpush1.bf16.msra.mxu0 %v1158
      %1192 = vmatprep.subr.bf16.mxu0 0
      %1193 = vmatpush1.bf16.msra.mxu0 %v1159
      %1194 = vmatprep.subr.bf16.mxu0 0
      %1195 = vmatpush1.bf16.msra.mxu0 %v1160
      %1196 = vmatprep.subr.bf16.mxu0 0
      %1197 = vmatpush1.bf16.msra.mxu0 %v1161
      %1198 = vmatprep.subr.bf16.mxu0 0
      %1199 = vmatpush1.bf16.msra.mxu0 %v1162
      %1200 = vmatprep.subr.bf16.mxu0 0
      %1201 = vmatpush1.bf16.msra.mxu0 %v1163
      %1202 = vmatprep.subr.bf16.mxu0 0
      %1203 = vmatpush1.bf16.msra.mxu0 %v1164
      %1204 = vmatprep.subr.bf16.mxu0 0
      %1205 = vmatpush1.bf16.msra.mxu0 %v1165
      %1206 = vmatprep.subr.bf16.mxu0 0
      %1207 = vmatpush1.bf16.msra.mxu0 %v1166
      %1208 = vmatprep.subr.bf16.mxu0 0
      %1209 = vmatpush1.bf16.msra.mxu0 %v1167
      %1210 = vmatprep.subr.bf16.mxu0 0
      %1211 = vmatpush1.bf16.msra.mxu0 %v1168
      %1212 = vmatprep.subr.bf16.mxu0 0
      %1213 = vmatpush1.bf16.msra.mxu0 %v1169
      %1214 = vmatprep.subr.bf16.mxu0 0
      %1215 = vmatpush1.bf16.msra.mxu0 %v1170
      %1216 = vmatprep.subr.bf16.mxu0 0
      %1217 = vmatpush1.bf16.msra.mxu0 %v1171
      %1218 = vmatprep.subr.bf16.mxu0 0
      %1219 = vmatpush1.bf16.msra.mxu0 %v1172
      %1220 = vmatprep.subr.bf16.mxu0 0
      %1221 = vmatpush1.bf16.msra.mxu0 %v1173
      %1222 = vmatprep.mubr.bf16.mxu0 %v1024
      %1223 = vmatmul.mubr.bf16.gmra.mrb[0].mxu0 %v1023
      %v1224 = vpop.f32.mrb[0].mxu0
      %v1225 = vadd.f32 %v1092, %v1224
      %v1226 = vpop.f32.mrb[0].mxu0
      %v1227 = vpop.f32.mrb[0].mxu0
      %v1228 = vadd.f32 %v1092, %v1227
      %v1229 = vpop.f32.mrb[0].mxu0
      %1230 = vmatprep.mubr.bf16.mxu0 %v1026
      %1231 = vmatmul.mubr.bf16.gmra.mrb[0].mxu0 %v1025
      %v1232 = vpop.f32.mrb[0].mxu0
      %v1233 = vadd.f32 %v1092, %v1232
      %v1234 = vpop.f32.mrb[0].mxu0
      %v1235 = vpop.f32.mrb[0].mxu0
      %v1236 = vadd.f32 %v1092, %v1235
      %v1237 = vpop.f32.mrb[0].mxu0
      %1238 = vmatprep.mubr.bf16.mxu0 %v1028
      %1239 = vmatmul.mubr.bf16.gmra.mrb[0].mxu0 %v1027
      %v1240 = vpop.f32.mrb[0].mxu0
      %v1241 = vadd.f32 %v1092, %v1240
      %v1242 = vpop.f32.mrb[0].mxu0
      %v1243 = vpop.f32.mrb[0].mxu0
      %v1244 = vadd.f32 %v1092, %v1243
      %v1245 = vpop.f32.mrb[0].mxu0
      %1246 = vmatprep.mubr.bf16.mxu0 %v1030
      %1247 = vmatmul.mubr.bf16.gmra.mrb[0].mxu0 %v1029
      %v1248 = vpop.f32.mrb[0].mxu0
      %v1249 = vadd.f32 %v1092, %v1248
      %v1250 = vpop.f32.mrb[0].mxu0
      %v1251 = vpop.f32.mrb[0].mxu0
      %v1252 = vadd.f32 %v1092, %v1251
      %v1253 = vpop.f32.mrb[0].mxu0
      %1254 = vmatprep.mubr.bf16.mxu0 %v1032
      %1255 = vmatmul.mubr.bf16.gmra.mrb[0].mxu0 %v1031
      %v1256 = vpop.f32.mrb[0].mxu0
      %v1257 = vadd.f32 %v1092, %v1256
      %v1258 = vpop.f32.mrb[0].mxu0
      %v1259 = vpop.f32.mrb[0].mxu0
      %v1260 = vadd.f32 %v1092, %v1259
      %v1261 = vpop.f32.mrb[0].mxu0
      %1262 = vmatprep.mubr.bf16.mxu0 %v1034
      %1263 = vmatmul.mubr.bf16.gmra.mrb[0].mxu0 %v1033
      %v1264 = vpop.f32.mrb[0].mxu0
      %v1265 = vadd.f32 %v1092, %v1264
      %v1266 = vpop.f32.mrb[0].mxu0
      %v1267 = vpop.f32.mrb[0].mxu0
      %v1268 = vadd.f32 %v1092, %v1267
      %v1269 = vpop.f32.mrb[0].mxu0
      %1270 = vmatprep.mubr.bf16.mxu0 %v1036
      %1271 = vmatmul.mubr.bf16.gmra.mrb[0].mxu0 %v1035
      %v1272 = vpop.f32.mrb[0].mxu0
      %v1273 = vadd.f32 %v1092, %v1272
      %v1274 = vpop.f32.mrb[0].mxu0
      %v1275 = vpop.f32.mrb[0].mxu0
      %v1276 = vadd.f32 %v1092, %v1275
      %v1277 = vpop.f32.mrb[0].mxu0
      %1278 = vmatprep.mubr.bf16.mxu0 %v1038
      %1279 = vmatmul.mubr.bf16.gmra.mrb[0].mxu0 %v1037
      %v1280 = vpop.f32.mrb[0].mxu0
      %v1281 = vadd.f32 %v1092, %v1280
      %v1282 = vpop.f32.mrb[0].mxu0
      %v1283 = vpop.f32.mrb[0].mxu0
      %v1284 = vadd.f32 %v1092, %v1283
      %v1285 = vpop.f32.mrb[0].mxu0
      %1286 = vmatprep.mubr.bf16.mxu0 %v1040
      %1287 = vmatmul.mubr.bf16.gmra.mrb[0].mxu0 %v1039
      %v1288 = vpop.f32.mrb[0].mxu0
      %v1289 = vadd.f32 %v1092, %v1288
      %v1290 = vpop.f32.mrb[0].mxu0
      %v1291 = vpop.f32.mrb[0].mxu0
      %v1292 = vadd.f32 %v1092, %v1291
      %v1293 = vpop.f32.mrb[0].mxu0
      %1294 = vmatprep.mubr.bf16.mxu0 %v1042
      %1295 = vmatmul.mubr.bf16.gmra.mrb[0].mxu0 %v1041
      %v1296 = vpop.f32.mrb[0].mxu0
      %v1297 = vadd.f32 %v1092, %v1296
      %v1298 = vpop.f32.mrb[0].mxu0
      %v1299 = vpop.f32.mrb[0].mxu0
      %v1300 = vadd.f32 %v1092, %v1299
      %v1301 = vpop.f32.mrb[0].mxu0
      %1302 = vmatprep.mubr.bf16.mxu0 %v1044
      %1303 = vmatmul.mubr.bf16.gmra.mrb[0].mxu0 %v1043
      %v1304 = vpop.f32.mrb[0].mxu0
      %v1305 = vadd.f32 %v1092, %v1304
      %v1306 = vpop.f32.mrb[0].mxu0
      %v1307 = vpop.f32.mrb[0].mxu0
      %v1308 = vadd.f32 %v1092, %v1307
      %v1309 = vpop.f32.mrb[0].mxu0
      %1310 = vmatprep.mubr.bf16.mxu0 %v1046
      %1311 = vmatmul.mubr.bf16.gmra.mrb[0].mxu0 %v1045
      %v1312 = vpop.f32.mrb[0].mxu0
      %v1313 = vadd.f32 %v1092, %v1312
      %v1314 = vpop.f32.mrb[0].mxu0
      %v1315 = vpop.f32.mrb[0].mxu0
      %v1316 = vadd.f32 %v1092, %v1315
      %v1317 = vpop.f32.mrb[0].mxu0
      %1318 = vmatprep.mubr.bf16.mxu0 %v1048
      %1319 = vmatmul.mubr.bf16.gmra.mrb[0].mxu0 %v1047
      %v1320 = vpop.f32.mrb[0].mxu0
      %v1321 = vadd.f32 %v1092, %v1320
      %v1322 = vpop.f32.mrb[0].mxu0
      %v1323 = vpop.f32.mrb[0].mxu0
      %v1324 = vadd.f32 %v1092, %v1323
      %v1325 = vpop.f32.mrb[0].mxu0
      %1326 = vmatprep.mubr.bf16.mxu0 %v1050
      %1327 = vmatmul.mubr.bf16.gmra.mrb[0].mxu0 %v1049
      %v1328 = vpop.f32.mrb[0].mxu0
      %v1329 = vadd.f32 %v1092, %v1328
      %v1330 = vpop.f32.mrb[0].mxu0
      %v1331 = vpop.f32.mrb[0].mxu0
      %v1332 = vadd.f32 %v1092, %v1331
      %v1333 = vpop.f32.mrb[0].mxu0
      %1334 = vmatprep.mubr.bf16.mxu0 %v1052
      %1335 = vmatmul.mubr.bf16.gmra.mrb[0].mxu0 %v1051
      %v1336 = vpop.f32.mrb[0].mxu0
      %v1337 = vadd.f32 %v1092, %v1336
      %v1338 = vpop.f32.mrb[0].mxu0
      %v1339 = vpop.f32.mrb[0].mxu0
      %v1340 = vadd.f32 %v1092, %v1339
      %v1341 = vpop.f32.mrb[0].mxu0
      %1342 = vmatprep.mubr.bf16.mxu0 %v1054
      %1343 = vmatmul.mubr.bf16.gmra.mrb[0].mxu0 %v1053
      %v1344 = vpop.f32.mrb[0].mxu0
      %v1345 = vadd.f32 %v1092, %v1344
      %v1346 = vpop.f32.mrb[0].mxu0
      %v1347 = vpop.f32.mrb[0].mxu0
      %v1348 = vadd.f32 %v1092, %v1347
      %v1349 = vpop.f32.mrb[0].mxu0
      %1350 = vdwg.mxu0
      %v1351 = vmax.f32 %v1225, 0.0
      %v1352 = vmax.f32 %v1228, 0.0
      %v1353 = vmax.f32 %v1233, 0.0
      %v1354 = vmax.f32 %v1236, 0.0
      %v1355 = vmax.f32 %v1241, 0.0
      %v1356 = vmax.f32 %v1244, 0.0
      %v1357 = vmax.f32 %v1249, 0.0
      %v1358 = vmax.f32 %v1252, 0.0
      %v1359 = vmax.f32 %v1257, 0.0
      %v1360 = vmax.f32 %v1260, 0.0
      %v1361 = vmax.f32 %v1265, 0.0
      %v1362 = vmax.f32 %v1268, 0.0
      %v1363 = vmax.f32 %v1273, 0.0
      %v1364 = vmax.f32 %v1276, 0.0
      %v1365 = vmax.f32 %v1281, 0.0
      %v1366 = vmax.f32 %v1284, 0.0
      %v1367 = vmax.f32 %v1289, 0.0
      %v1368 = vmax.f32 %v1292, 0.0
      %v1369 = vmax.f32 %v1297, 0.0
      %v1370 = vmax.f32 %v1300, 0.0
      %v1371 = vmax.f32 %v1305, 0.0
      %v1372 = vmax.f32 %v1308, 0.0
      %v1373 = vmax.f32 %v1313, 0.0
      %v1374 = vmax.f32 %v1316, 0.0
      %v1375 = vmax.f32 %v1321, 0.0
      %v1376 = vmax.f32 %v1324, 0.0
      %v1377 = vmax.f32 %v1329, 0.0
      %v1378 = vmax.f32 %v1332, 0.0
      %v1379 = vmax.f32 %v1337, 0.0
      %v1380 = vmax.f32 %v1340, 0.0
      %v1381 = vmax.f32 %v1345, 0.0
      %v1382 = vmax.f32 %v1348, 0.0
      %v1383 = vpack.c.bf16 %v1352, %v1351
      %v1384 = vpack.c.bf16 %v1354, %v1353
      %v1385 = vpack.c.bf16 %v1356, %v1355
      %v1386 = vpack.c.bf16 %v1358, %v1357
      %v1387 = vpack.c.bf16 %v1360, %v1359
      %v1388 = vpack.c.bf16 %v1362, %v1361
      %v1389 = vpack.c.bf16 %v1364, %v1363
      %v1390 = vpack.c.bf16 %v1366, %v1365
      %v1391 = vpack.c.bf16 %v1368, %v1367
      %v1392 = vpack.c.bf16 %v1370, %v1369
      %v1393 = vpack.c.bf16 %v1372, %v1371
      %v1394 = vpack.c.bf16 %v1374, %v1373
      %v1395 = vpack.c.bf16 %v1376, %v1375
      %v1396 = vpack.c.bf16 %v1378, %v1377
      %v1397 = vpack.c.bf16 %v1380, %v1379
      %v1398 = vpack.c.bf16 %v1382, %v1381
      %v1399 = vld [vmem:[%s7] sm:$0xf]
      %v1400 = vld [vmem:[%s7 + $0x4] sm:$0xf]
      %v1401 = vld [vmem:[%s7 + $0x8] sm:$0xf]
      %v1402 = vld [vmem:[%s7 + $0xc] sm:$0xf]
      %v1403 = vld [vmem:[%s7 + $0x10] sm:$0xf]
      %v1404 = vld [vmem:[%s7 + $0x14] sm:$0xf]
      %v1405 = vld [vmem:[%s7 + $0x18] sm:$0xf]
      %v1406 = vld [vmem:[%s7 + $0x1c] sm:$0xf]
      %v1407 = vld [vmem:[%s7 + $0x20] sm:$0xf]
      %v1408 = vld [vmem:[%s7 + $0x24] sm:$0xf]
      %v1409 = vld [vmem:[%s7 + $0x28] sm:$0xf]
      %v1410 = vld [vmem:[%s7 + $0x2c] sm:$0xf]
      %v1411 = vld [vmem:[%s7 + $0x30] sm:$0xf]
      %v1412 = vld [vmem:[%s7 + $0x34] sm:$0xf]
      %v1413 = vld [vmem:[%s7 + $0x38] sm:$0xf]
      %v1414 = vld [vmem:[%s7 + $0x3c] sm:$0xf]
      %v1415 = vld [vmem:[%s8] sm:$0x1]
      %v1417 = vlaneseq
      %v1418 = vshrl.u32 %v1417, 7
      %v1419 = vsub.s32 0, %v1418
      %v1420 = vrot.slane %v1415, %v1419
      %v1438 = vunpack.c.l.b16 %v1399
      %v1439 = vunpack.c.l.b16 %v1400
      %v1440 = vunpack.c.l.b16 %v1401
      %v1441 = vunpack.c.l.b16 %v1402
      %v1442 = vunpack.c.l.b16 %v1403
      %v1443 = vunpack.c.l.b16 %v1404
      %v1444 = vunpack.c.l.b16 %v1405
      %v1445 = vunpack.c.l.b16 %v1406
      %v1446 = vunpack.c.l.b16 %v1407
      %v1447 = vunpack.c.l.b16 %v1408
      %v1448 = vunpack.c.l.b16 %v1409
      %v1449 = vunpack.c.l.b16 %v1410
      %v1450 = vunpack.c.l.b16 %v1411
      %v1451 = vunpack.c.l.b16 %v1412
      %v1452 = vunpack.c.l.b16 %v1413
      %v1453 = vunpack.c.l.b16 %v1414
      %v1454 = vpack.c.b16 %v1439, %v1438
      %v1455 = vpack.c.b16 %v1441, %v1440
      %v1456 = vpack.c.b16 %v1443, %v1442
      %v1457 = vpack.c.b16 %v1445, %v1444
      %v1458 = vpack.c.b16 %v1447, %v1446
      %v1459 = vpack.c.b16 %v1449, %v1448
      %v1460 = vpack.c.b16 %v1451, %v1450
      %v1461 = vpack.c.b16 %v1453, %v1452
      %1470 = vmatprep.subr.bf16.mxu0 0
      %1471 = vmatpush1.bf16.msra.mxu0 %v1454
      %1472 = vmatprep.subr.bf16.mxu0 0
      %1473 = vmatpush1.bf16.msra.mxu0 %v1455
      %1474 = vmatprep.subr.bf16.mxu0 0
      %1475 = vmatpush1.bf16.msra.mxu0 %v1456
      %1476 = vmatprep.subr.bf16.mxu0 0
      %1477 = vmatpush1.bf16.msra.mxu0 %v1457
      %1478 = vmatprep.subr.bf16.mxu0 0
      %1479 = vmatpush1.bf16.msra.mxu0 %v1458
      %1480 = vmatprep.subr.bf16.mxu0 0
      %1481 = vmatpush1.bf16.msra.mxu0 %v1459
      %1482 = vmatprep.subr.bf16.mxu0 0
      %1483 = vmatpush1.bf16.msra.mxu0 %v1460
      %1484 = vmatprep.subr.bf16.mxu0 0
      %1485 = vmatpush1.bf16.msra.mxu0 %v1461
      %1486 = vmatprep.subr.bf16.mxu0 0
      %1487 = vmatpush1.bf16.msra.mxu0 0
      %1488 = vmatprep.subr.bf16.mxu0 0
      %1489 = vmatpush1.bf16.msra.mxu0 0
      %1490 = vmatprep.subr.bf16.mxu0 0
      %1491 = vmatpush1.bf16.msra.mxu0 0
      %1492 = vmatprep.subr.bf16.mxu0 0
      %1493 = vmatpush1.bf16.msra.mxu0 0
      %1494 = vmatprep.subr.bf16.mxu0 0
      %1495 = vmatpush1.bf16.msra.mxu0 0
      %1496 = vmatprep.subr.bf16.mxu0 0
      %1497 = vmatpush1.bf16.msra.mxu0 0
      %1498 = vmatprep.subr.bf16.mxu0 0
      %1499 = vmatpush1.bf16.msra.mxu0 0
      %1500 = vmatprep.subr.bf16.mxu0 0
      %1501 = vmatpush1.bf16.msra.mxu0 0
      %1502 = vmatprep.mubr.bf16.mxu0 0
      %1503 = vmatmul.mubr.bf16.gmra.mrb[0].mxu0 %v1383
      %v1504 = vpop.f32.mrb[0].mxu0
      %v1505 = vadd.f32 %v1420, %v1504
      %v1506 = vpop.f32.mrb[0].mxu0
      %v1507 = vpop.f32.mrb[0].mxu0
      %v1508 = vadd.f32 %v1420, %v1507
      %v1509 = vpop.f32.mrb[0].mxu0
      %1510 = vmatprep.mubr.bf16.mxu0 0
      %1511 = vmatmul.mubr.bf16.gmra.mrb[0].mxu0 %v1384
      %v1512 = vpop.f32.mrb[0].mxu0
      %v1513 = vadd.f32 %v1420, %v1512
      %v1514 = vpop.f32.mrb[0].mxu0
      %v1515 = vpop.f32.mrb[0].mxu0
      %v1516 = vadd.f32 %v1420, %v1515
      %v1517 = vpop.f32.mrb[0].mxu0
      %1518 = vmatprep.mubr.bf16.mxu0 0
      %1519 = vmatmul.mubr.bf16.gmra.mrb[0].mxu0 %v1385
      %v1520 = vpop.f32.mrb[0].mxu0
      %v1521 = vadd.f32 %v1420, %v1520
      %v1522 = vpop.f32.mrb[0].mxu0
      %v1523 = vpop.f32.mrb[0].mxu0
      %v1524 = vadd.f32 %v1420, %v1523
      %v1525 = vpop.f32.mrb[0].mxu0
      %1526 = vmatprep.mubr.bf16.mxu0 0
      %1527 = vmatmul.mubr.bf16.gmra.mrb[0].mxu0 %v1386
      %v1528 = vpop.f32.mrb[0].mxu0
      %v1529 = vadd.f32 %v1420, %v1528
      %v1530 = vpop.f32.mrb[0].mxu0
      %v1531 = vpop.f32.mrb[0].mxu0
      %v1532 = vadd.f32 %v1420, %v1531
      %v1533 = vpop.f32.mrb[0].mxu0
      %1534 = vmatprep.mubr.bf16.mxu0 0
      %1535 = vmatmul.mubr.bf16.gmra.mrb[0].mxu0 %v1387
      %v1536 = vpop.f32.mrb[0].mxu0
      %v1537 = vadd.f32 %v1420, %v1536
      %v1538 = vpop.f32.mrb[0].mxu0
      %v1539 = vpop.f32.mrb[0].mxu0
      %v1540 = vadd.f32 %v1420, %v1539
      %v1541 = vpop.f32.mrb[0].mxu0
      %1542 = vmatprep.mubr.bf16.mxu0 0
      %1543 = vmatmul.mubr.bf16.gmra.mrb[0].mxu0 %v1388
      %v1544 = vpop.f32.mrb[0].mxu0
      %v1545 = vadd.f32 %v1420, %v1544
      %v1546 = vpop.f32.mrb[0].mxu0
      %v1547 = vpop.f32.mrb[0].mxu0
      %v1548 = vadd.f32 %v1420, %v1547
      %v1549 = vpop.f32.mrb[0].mxu0
      %1550 = vmatprep.mubr.bf16.mxu0 0
      %1551 = vmatmul.mubr.bf16.gmra.mrb[0].mxu0 %v1389
      %v1552 = vpop.f32.mrb[0].mxu0
      %v1553 = vadd.f32 %v1420, %v1552
      %v1554 = vpop.f32.mrb[0].mxu0
      %v1555 = vpop.f32.mrb[0].mxu0
      %v1556 = vadd.f32 %v1420, %v1555
      %v1557 = vpop.f32.mrb[0].mxu0
      %1558 = vmatprep.mubr.bf16.mxu0 0
      %1559 = vmatmul.mubr.bf16.gmra.mrb[0].mxu0 %v1390
      %v1560 = vpop.f32.mrb[0].mxu0
      %v1561 = vadd.f32 %v1420, %v1560
      %v1562 = vpop.f32.mrb[0].mxu0
      %v1563 = vpop.f32.mrb[0].mxu0
      %v1564 = vadd.f32 %v1420, %v1563
      %v1565 = vpop.f32.mrb[0].mxu0
      %1566 = vmatprep.mubr.bf16.mxu0 0
      %1567 = vmatmul.mubr.bf16.gmra.mrb[0].mxu0 %v1391
      %v1568 = vpop.f32.mrb[0].mxu0
      %v1569 = vadd.f32 %v1420, %v1568
      %v1570 = vpop.f32.mrb[0].mxu0
      %v1571 = vpop.f32.mrb[0].mxu0
      %v1572 = vadd.f32 %v1420, %v1571
      %v1573 = vpop.f32.mrb[0].mxu0
      %1574 = vmatprep.mubr.bf16.mxu0 0
      %1575 = vmatmul.mubr.bf16.gmra.mrb[0].mxu0 %v1392
      %v1576 = vpop.f32.mrb[0].mxu0
      %v1577 = vadd.f32 %v1420, %v1576
      %v1578 = vpop.f32.mrb[0].mxu0
      %v1579 = vpop.f32.mrb[0].mxu0
      %v1580 = vadd.f32 %v1420, %v1579
      %v1581 = vpop.f32.mrb[0].mxu0
      %1582 = vmatprep.mubr.bf16.mxu0 0
      %1583 = vmatmul.mubr.bf16.gmra.mrb[0].mxu0 %v1393
      %v1584 = vpop.f32.mrb[0].mxu0
      %v1585 = vadd.f32 %v1420, %v1584
      %v1586 = vpop.f32.mrb[0].mxu0
      %v1587 = vpop.f32.mrb[0].mxu0
      %v1588 = vadd.f32 %v1420, %v1587
      %v1589 = vpop.f32.mrb[0].mxu0
      %1590 = vmatprep.mubr.bf16.mxu0 0
      %1591 = vmatmul.mubr.bf16.gmra.mrb[0].mxu0 %v1394
      %v1592 = vpop.f32.mrb[0].mxu0
      %v1593 = vadd.f32 %v1420, %v1592
      %v1594 = vpop.f32.mrb[0].mxu0
      %v1595 = vpop.f32.mrb[0].mxu0
      %v1596 = vadd.f32 %v1420, %v1595
      %v1597 = vpop.f32.mrb[0].mxu0
      %1598 = vmatprep.mubr.bf16.mxu0 0
      %1599 = vmatmul.mubr.bf16.gmra.mrb[0].mxu0 %v1395
      %v1600 = vpop.f32.mrb[0].mxu0
      %v1601 = vadd.f32 %v1420, %v1600
      %v1602 = vpop.f32.mrb[0].mxu0
      %v1603 = vpop.f32.mrb[0].mxu0
      %v1604 = vadd.f32 %v1420, %v1603
      %v1605 = vpop.f32.mrb[0].mxu0
      %1606 = vmatprep.mubr.bf16.mxu0 0
      %1607 = vmatmul.mubr.bf16.gmra.mrb[0].mxu0 %v1396
      %v1608 = vpop.f32.mrb[0].mxu0
      %v1609 = vadd.f32 %v1420, %v1608
      %v1610 = vpop.f32.mrb[0].mxu0
      %v1611 = vpop.f32.mrb[0].mxu0
      %v1612 = vadd.f32 %v1420, %v1611
      %v1613 = vpop.f32.mrb[0].mxu0
      %1614 = vmatprep.mubr.bf16.mxu0 0
      %1615 = vmatmul.mubr.bf16.gmra.mrb[0].mxu0 %v1397
      %v1616 = vpop.f32.mrb[0].mxu0
      %v1617 = vadd.f32 %v1420, %v1616
      %v1618 = vpop.f32.mrb[0].mxu0
      %v1619 = vpop.f32.mrb[0].mxu0
      %v1620 = vadd.f32 %v1420, %v1619
      %v1621 = vpop.f32.mrb[0].mxu0
      %1622 = vmatprep.mubr.bf16.mxu0 0
      %1623 = vmatmul.mubr.bf16.gmra.mrb[0].mxu0 %v1398
      %v1624 = vpop.f32.mrb[0].mxu0
      %v1625 = vadd.f32 %v1420, %v1624
      %v1626 = vpop.f32.mrb[0].mxu0
      %v1627 = vpop.f32.mrb[0].mxu0
      %v1628 = vadd.f32 %v1420, %v1627
      %v1629 = vpop.f32.mrb[0].mxu0
      %1630 = vdwg.mxu0
      %1631 = vst [vmem:[%s334] sm:$0xff] %v1505
      %1632 = vst [vmem:[%s334 + $0x8] sm:$0xff] %v1508
      %1633 = vst [vmem:[%s334 + $0x10] sm:$0xff] %v1513
      %1634 = vst [vmem:[%s334 + $0x18] sm:$0xff] %v1516
      %1635 = vst [vmem:[%s334 + $0x20] sm:$0xff] %v1521
      %1636 = vst [vmem:[%s334 + $0x28] sm:$0xff] %v1524
      %1637 = vst [vmem:[%s334 + $0x30] sm:$0xff] %v1529
      %1638 = vst [vmem:[%s334 + $0x38] sm:$0xff] %v1532
      %1639 = vst [vmem:[%s334 + $0x40] sm:$0xff] %v1537
      %1640 = vst [vmem:[%s334 + $0x48] sm:$0xff] %v1540
      %1641 = vst [vmem:[%s334 + $0x50] sm:$0xff] %v1545
      %1642 = vst [vmem:[%s334 + $0x58] sm:$0xff] %v1548
      %1643 = vst [vmem:[%s334 + $0x60] sm:$0xff] %v1553
      %1644 = vst [vmem:[%s334 + $0x68] sm:$0xff] %v1556
      %1645 = vst [vmem:[%s334 + $0x70] sm:$0xff] %v1561
      %1646 = vst [vmem:[%s334 + $0x78] sm:$0xff] %v1564
      %1647 = vst [vmem:[%s334 + $0x80] sm:$0xff] %v1569
      %1648 = vst [vmem:[%s334 + $0x88] sm:$0xff] %v1572
      %1649 = vst [vmem:[%s334 + $0x90] sm:$0xff] %v1577
      %1650 = vst [vmem:[%s334 + $0x98] sm:$0xff] %v1580
      %1651 = vst [vmem:[%s334 + $0xa0] sm:$0xff] %v1585
      %1652 = vst [vmem:[%s334 + $0xa8] sm:$0xff] %v1588
      %1653 = vst [vmem:[%s334 + $0xb0] sm:$0xff] %v1593
      %1654 = vst [vmem:[%s334 + $0xb8] sm:$0xff] %v1596
      %1655 = vst [vmem:[%s334 + $0xc0] sm:$0xff] %v1601
      %1656 = vst [vmem:[%s334 + $0xc8] sm:$0xff] %v1604
      %1657 = vst [vmem:[%s334 + $0xd0] sm:$0xff] %v1609
      %1658 = vst [vmem:[%s334 + $0xd8] sm:$0xff] %v1612
      %1659 = vst [vmem:[%s334 + $0xe0] sm:$0xff] %v1617
      %1660 = vst [vmem:[%s334 + $0xe8] sm:$0xff] %v1620
      %1661 = vst [vmem:[%s334 + $0xf0] sm:$0xff] %v1625
      %1662 = vst [vmem:[%s334 + $0xf8] sm:$0xff] %v1628
      %s1663 = smul.u32 32, %s20
      %p1664 = scmp.lt.s32.totalorder %s1663, 63
      %s1665 = scalar_select %p1664, %s1663, 63
      %s1666 = smul.addr %s1665, 8
      %s1667 = scalar_lea.vmem %s9, %s1666
      // Predicated region
      $region57: #{mlp_forward.1} parent=55 // pred_check
        %p1668 = pneg %p232
      $region58: #{mlp_forward.1} parent=55 // pred_check_branch
        %1670 = sbr.rel (%p1668) target = $region60
      $region59: #{mlp_forward.1} parent=55 // pred_region
        %s1671 = smul.u32 32, %s20
      $region60: #{mlp_forward.1} parent=55 // pred_fallthru
        _
    $region56: #{mlp_forward.1} parent=5 // pred_fallthru
      _
    %p1672 = scmp.le.s32.totalorder 2, %s15
    // Predicated region
    $region61: #{mlp_forward.1} parent=5 // pred_check
      %p1673 = pneg %p1672
    $region62: #{mlp_forward.1} parent=5 // pred_check_branch
      %1675 = sbr.rel (%p1673) target = $region64
    $region63: #{mlp_forward.1} parent=5 // pred_region
      %s1676 = ssub.s32 %s15, 2
      // Predicated region
      $region65: #{mlp_forward.1} parent=63 // pred_check
        %p1677 = pneg %p238
      $region66: #{mlp_forward.1} parent=63 // pred_check_branch
        %1679 = sbr.rel (%p1677) target = $region68
      $region67: #{mlp_forward.1} parent=63 // pred_region
        %s1680 = smul.u32 32, %s21
        %p1681 = scmp.lt.s32.totalorder %s1680, 63
        %s1682 = scalar_select %p1681, %s1680, 63
        %s1683 = smul.addr %s1682, 8
        %s1684 = scalar_lea.vmem %s9, %s1683
      $region68: #{mlp_forward.1} parent=63 // pred_fallthru
        _
    $region64: #{mlp_forward.1} parent=5 // pred_fallthru
      _
  $region6: #{mlp_forward.1} parent=0 // loop_footer
    %s19 = sadd.s32 1, %s15
  $region7: #{mlp_forward.1} parent=0 // loop_footer_branch
    %14 = sbr.rel target = $region3
  $region8: #{mlp_forward.1} parent=0 // loop_exit
    _

</llo_original>
